<compile_context>
chip_gen: v6e
topology: v6e:2x2x1
jax: 0.10.0
libtpu: 0.0.40
codegen_flags: <defaults>
</compile_context>

<pallas_src>
import functools

import jax
import jax.numpy as jnp
from jax.experimental import pallas as pl
from jax.experimental.pallas import tpu as pltpu


C1 = 256   # stage-1 output channels
C2 = 512   # stage-2 output channels
K1 = 5     # stage-1 kernel size (padding 2)
K2 = 3     # stage-2 kernel size (padding 1)


def _fused_kernel(xp_ref, w1_ref, w2_ref, b2_ref, o_ref, *, T2, Hp):
    """Fused conv1(k=5)+ReLU+pool2 -> conv2(k=3)+ReLU+pool2 for one
    (batch, length-tile) grid step.

    xp_ref : (1, 1, R1p, KC1p) bf16  im2col-packed stage-1 input for this tile
                                     (incl. halo rows, bias lane, zero pads)
    w1_ref : (KC1p, 256)       bf16  tap-major stage-1 weight, bias folded in
    w2_ref : (768, 512)        bf16  tap-major stage-2 weight (3 taps concat)
    b2_ref : (1, 512)          f32
    o_ref  : (1, T2, 512)            final-output tile
    """
    n = 2 * T2

    # ---- Stage 1: Conv1d(k=5,'same') + bias as ONE im2col matmul.  Rows that
    # correspond to conv padding / pool-dropped tail have an all-zero input
    # row (bias lane included), so they come out as exact zeros after ReLU.
    xp = xp_ref[0, 0]                                          # (R1p, KC1p)
    c1 = jnp.dot(xp, w1_ref[...],
                 preferred_element_type=jnp.float32).astype(jnp.bfloat16)
    c1 = jnp.maximum(c1, 0)                                    # ReLU, bf16
    # MaxPool1d(2): (Hp, 2, C1) -> max over the window axis.
    h1 = jnp.max(c1.reshape(Hp, 2, C1), axis=1)                # (Hp, 256) bf16

    # ---- Stage 2: Conv1d(k=3,'same') as ONE K=768 matmul on the h1 im2col.
    # h1 local row l corresponds to h1pad[l] of the padded conv-2 input, so
    # c2 row r needs rows l = r, r+1, r+2.
    im2 = jnp.concatenate([h1[0:n], h1[1:n + 1], h1[2:n + 2]], axis=-1)
    acc = jnp.dot(im2, w2_ref[...], preferred_element_type=jnp.float32)
    y = jnp.maximum(acc + b2_ref[...], 0.0)                    # (2*T2, 512) f32

    # MaxPool1d(2) + store (lane-dense: last dim 512).  Out-of-range rows of
    # the last (ragged) tile are clipped by Pallas on writeback.
    o_ref[0] = jnp.max(y.reshape(T2, 2, C2), axis=1).astype(o_ref.dtype)


def _pick_tile(L2, B, max_rows):
    """Choose T2 (final-output rows per length tile) and tile count NT.

    The last tile may be ragged (Pallas clips the out-of-bounds rows).  When
    B == 1 we force at least two grid steps so both v7x TensorCores get work.
    """
    t = min(max_rows, L2)
    if B == 1 and L2 >= 16:
        t = min(t, -(-L2 // 2))
    if t < L2:
        t = max(8, -(-t // 8) * 8)      # sublane-align the tile when tiling
    nt = -(-L2 // t)
    return t, nt


def _build_stage1_input(x_ncl, T2, NT, R1p, KC1p, L1):
    """NCL input -> bf16 im2col tiles (B, NT, R1p, KC1p).

    Folds the NCL->NLC transpose, the k=5 zero padding, the bias lane, the
    MaxPool1d tail drop, the lane padding to KC1p and the per-tile halo
    extraction into one pass over the (small, C_in-wide) input.
    """
    B, C_in, L = x_ncl.shape
    KC1 = K1 * C_in
    Lc = 2 * L1                                              # rows surviving pool 1
    x = jnp.transpose(x_ncl, (0, 2, 1)).astype(jnp.float32)  # (B, L, C_in)
    xpad = jnp.pad(x, ((0, 0), (2, 2), (0, 0)))              # k=5 'same' pad
    # im2col row g holds concat_k x[g-2+k]; only the Lc pool-surviving rows.
    xcat = jnp.concatenate([xpad[:, k:k + Lc, :] for k in range(K1)], axis=-1)
    # Bias lane: 1.0 on valid rows (zero everywhere padded below).
    xcat = jnp.concatenate([xcat, jnp.ones((B, Lc, 1), jnp.float32)], axis=-1)
    if KC1p > KC1 + 1:
        xcat = jnp.pad(xcat, ((0, 0), (0, 0), (0, KC1p - KC1 - 1)))
    # 2 zero halo rows in front; enough zero rows behind so every tile's
    # (possibly ragged) R1p-row window is in bounds.
    back = max(0, (NT - 1) * 4 * T2 + R1p - (Lc + 2))
    xcat = jnp.pad(xcat, ((0, 0), (2, back), (0, 0)))
    idx = (4 * T2) * jnp.arange(NT)[:, None] + jnp.arange(R1p)[None, :]
    xt = xcat[:, idx, :]                                     # (B, NT, R1p, KC1p)
    return xt.astype(jnp.bfloat16)


def _vmem_bytes_estimate(T2, R1p, KC1p, out_itemsize):
    """Rough per-step VMEM footprint (pipeline buffers + in-kernel temps)."""
    n = 2 * T2
    pipeline = 2 * (R1p * KC1p * 2 + KC1p * C1 * 2 + K2 * C1 * C2 * 2
                    + C2 * 4 + T2 * C2 * out_itemsize)
    working = (R1p * C1 * 6              # c1 f32 + bf16 copy
               + 2 * n * K2 * C1 * 2     # shifted windows + im2col (bf16)
               + 2 * n * C2 * 4          # acc + bias/relu copy (f32)
               + T2 * C2 * 4)            # pooled tile before store
    return pipeline + working


def init_net_forward(x_ncl, params, *, max_tile_rows=512, out_dtype=jnp.float32):
    """Replicates init_net.forward.  x_ncl: (B, C_in, L), PyTorch NCL layout.

    Returns (final_seq_len, final_feature_map); final_seq_len matches the
    PyTorch module's return value (x.shape[2] after the second pool).
    """
    w1, b1, w2, b2 = params
    B, C_in, L = x_ncl.shape
    assert L >= 4, "need at least 4 samples along the length axis"

    L1 = L // 2                    # length after pool 1 (floor, like MaxPool1d)
    L2 = L1 // 2                   # length after pool 2
    T2, NT = _pick_tile(L2, B, max_tile_rows)
    KC1 = K1 * C_in
    KC1p = -(-(KC1 + 1) // 32) * 32          # contraction (+bias lane) padded
    R1p = -(-(4 * T2 + 4) // 16) * 16        # stage-1 rows per tile, 16-aligned
    Hp = R1p // 2                            # pooled rows per tile, 8-aligned

    xt = _build_stage1_input(x_ncl, T2, NT, R1p, KC1p, L1)
    w1p = (jnp.zeros((KC1p, C1), jnp.float32)
           .at[:KC1, :].set(w1.astype(jnp.float32))
           .at[KC1, :].set(b1.astype(jnp.float32).reshape(C1)))   # bias folded
    w1p = w1p.astype(jnp.bfloat16)
    w2cat = w2.reshape(K2 * C1, C2).astype(jnp.bfloat16)
    b2f = b2.astype(jnp.float32).reshape(1, C2)

    kernel = functools.partial(_fused_kernel, T2=T2, Hp=Hp)

    out_isz = jnp.dtype(out_dtype).itemsize
    flops = 2 * B * NT * (R1p * KC1p * C1 + 2 * T2 * K2 * C1 * C2)
    bytes_accessed = (xt.size * 2 + w1p.size * 2 + w2cat.size * 2
                      + b2f.size * 4 + B * L2 * C2 * out_isz)
    est = _vmem_bytes_estimate(T2, R1p, KC1p, out_isz)
    vmem_limit = int(min(max(2 * est, 20 * 1024 * 1024), 56 * 1024 * 1024))

    out = pl.pallas_call(
        kernel,
        out_shape=jax.ShapeDtypeStruct((B, L2, C2), out_dtype),
        grid_spec=pltpu.PrefetchScalarGridSpec(
            num_scalar_prefetch=0,
            grid=(B, NT),
            in_specs=[
                pl.BlockSpec((1, 1, R1p, KC1p), lambda b, j: (b, j, 0, 0)),
                pl.BlockSpec((KC1p, C1), lambda b, j: (0, 0)),
                pl.BlockSpec((K2 * C1, C2), lambda b, j: (0, 0)),
                pl.BlockSpec((1, C2), lambda b, j: (0, 0)),
            ],
            out_specs=pl.BlockSpec((1, T2, C2), lambda b, j: (b, j, 0)),
        ),
        compiler_params=pltpu.CompilerParams(
            dimension_semantics=("parallel", "parallel"),
            vmem_limit_bytes=vmem_limit,
        ),
        cost_estimate=pl.CostEstimate(
            flops=flops, transcendentals=0, bytes_accessed=bytes_accessed),
    )(xt, w1p, w2cat, b2f)

    # PyTorch returns x.shape[2] (length axis); in (B, L, C) layout it's axis 1.
    return out.shape[1], out


def init_net_reference(x_ncl, params):
    """Pure-JAX f32 reference of the PyTorch forward (returns the feature map)."""
    w1, b1, w2, b2 = params
    B, C_in, L = x_ncl.shape
    x = jnp.transpose(x_ncl, (0, 2, 1)).astype(jnp.float32)
    xp = jnp.pad(x, ((0, 0), (2, 2), (0, 0)))
    c1 = sum(jnp.einsum("blc,co->blo", xp[:, k:k + L, :],
                        w1[k * C_in:(k + 1) * C_in, :]) for k in range(K1))
    c1 = jax.nn.relu(c1 + b1[None])
    L1 = L // 2
    h1 = jnp.max(c1[:, :2 * L1].reshape(B, L1, 2, C1), axis=2)
    h1p = jnp.pad(h1, ((0, 0), (1, 1), (0, 0)))
    c2 = sum(jnp.einsum("blc,co->blo", h1p[:, k:k + L1, :], w2[k])
             for k in range(K2))
    c2 = jax.nn.relu(c2 + b2[None])
    L2 = L1 // 2
    return jnp.max(c2[:, :2 * L2].reshape(B, L2, 2, C2), axis=2)


def make_params(key, n_channal):
    """Deterministic synthetic parameters (tap-major, channels-last layouts).

    w1: (5 * n_channal, 256)  == transpose of torch (256, n_channal, 5)
    w2: (3, 256, 512)         == torch (512, 256, 3) permuted to (3, 256, 512)
    """
    k1, k2, k3, k4 = jax.random.split(key, 4)
    w1 = jax.random.normal(k1, (K1 * n_channal, C1), jnp.float32) * 0.05
    b1 = jax.random.normal(k2, (1, C1), jnp.float32) * 0.05
    w2 = jax.random.normal(k3, (K2, C1, C2), jnp.float32) * 0.02
    b2 = jax.random.normal(k4, (1, C2), jnp.float32) * 0.02
    return (w1, b1, w2, b2)


def _check(x, params, **kw):
    seq_len, feat = init_net_forward(x, params, **kw)
    jax.block_until_ready(feat)
    ref = init_net_reference(x, params)
    B, _, L = x.shape
    assert seq_len == (L // 2) // 2, (seq_len, L)
    assert feat.shape == ref.shape, (feat.shape, ref.shape)
    err = float(jnp.max(jnp.abs(feat - ref)))
    assert jnp.allclose(feat, ref, atol=3e-2, rtol=3e-2), err
    return seq_len


if __name__ == "__main__":
    key = jax.random.PRNGKey(0)
    kx, kp = jax.random.split(key)

    C_IN = 4
    params = make_params(kp, C_IN)

    # Small shape matching the module (B=2, C_in=4, L=16): single tile.
    x = jax.random.normal(kx, (2, C_IN, 16), jnp.float32)       # NCL like torch
    assert _check(x, params) == 4

    # Multi-tile path with a ragged last tile (L2=30, T2=8 -> NT=4).
    xb = jax.random.normal(kx, (2, C_IN, 120), jnp.float32)
    assert _check(xb, params, max_tile_rows=8) == 30

    # Odd length (L = 1 mod 4) exercising the MaxPool1d tail drop, B == 1.
    xo = jax.random.normal(kx, (1, C_IN, 21), jnp.float32)
    assert _check(xo, params) == 5

    # B == 1 with larger L: default tile picker forces NT >= 2, ragged tail.
    xl = jax.random.normal(kx, (1, C_IN, 1029), jnp.float32)
    assert _check(xl, params) == 257

    print("KERNEL_OK")
</pallas_src>

<mosaic_0001>
module attributes {stable_mosaic.version = 11 : i64} {
  func.func @_fused_kernel(%arg0: i32, %arg1: i32, %arg2: memref<1x1x32x32xbf16, #tpu.memory_space<vmem>>, %arg3: memref<32x256xbf16, #tpu.memory_space<vmem>>, %arg4: memref<768x512xbf16, #tpu.memory_space<vmem>>, %arg5: memref<1x512xf32, #tpu.memory_space<vmem>>, %arg6: memref<1x4x512xf32, #tpu.memory_space<vmem>>) attributes {dimension_semantics = [#tpu.dimension_semantics<parallel>, #tpu.dimension_semantics<parallel>], iteration_bounds = array<i64: 2, 1>, scalar_prefetch = 0 : i64, scratch_operands = 0 : i64, tpu.core_type = #tpu.core_type<tc>, window_params = [{transform_indices = @transform_0, window_bounds = array<i64: 1, 1, 32, 32>}, {pipeline_mode = #tpu.pipeline_mode<synchronous>, transform_indices = @transform_1, window_bounds = array<i64: 32, 256>}, {pipeline_mode = #tpu.pipeline_mode<synchronous>, transform_indices = @transform_2, window_bounds = array<i64: 768, 512>}, {pipeline_mode = #tpu.pipeline_mode<synchronous>, transform_indices = @transform_3, window_bounds = array<i64: 1, 512>}, {transform_indices = @transform_4, window_bounds = array<i64: 1, 4, 512>}]} {
    %c0 = arith.constant 0 : index
    %c0_0 = arith.constant 0 : index
    %c0_1 = arith.constant 0 : index
    %c0_2 = arith.constant 0 : index
    %0 = vector.load %arg2[%c0, %c0_0, %c0_1, %c0_2] : memref<1x1x32x32xbf16, #tpu.memory_space<vmem>>, vector<1x1x32x32xbf16>
    %1 = vector.shape_cast %0 : vector<1x1x32x32xbf16> to vector<32x32xbf16>
    %c0_3 = arith.constant 0 : index
    %c0_4 = arith.constant 0 : index
    %2 = vector.load %arg3[%c0_3, %c0_4] : memref<32x256xbf16, #tpu.memory_space<vmem>>, vector<32x256xbf16>
    %cst = arith.constant dense<0.000000e+00> : vector<32x256xf32>
    %3 = tpu.matmul %1, %2, %cst {dimension_numbers = #tpu.dot_dimension_numbers<[1], [0], [0], [1], [0, 0, 1, 1], [], []>} : vector<32x32xbf16>, vector<32x256xbf16>, vector<32x256xf32> -> vector<32x256xf32>
    %4 = arith.truncf %3 : vector<32x256xf32> to vector<32x256xbf16>
    %cst_5 = arith.constant 0.000000e+00 : bf16
    %5 = vector.broadcast %cst_5 : bf16 to vector<32x256xbf16>
    %6 = arith.maximumf %4, %5 : vector<32x256xbf16>
    %7 = vector.shape_cast %6 : vector<32x256xbf16> to vector<16x2x256xbf16>
    %cst_6 = arith.constant dense<0xFF80> : vector<16x256xbf16>
    %8 = vector.multi_reduction <maximumf>, %7, %cst_6 [1] : vector<16x2x256xbf16> to vector<16x256xbf16>
    %9 = vector.extract_strided_slice %8 {offsets = [0, 0], sizes = [8, 256], strides = [1, 1]} : vector<16x256xbf16> to vector<8x256xbf16>
    %10 = vector.extract_strided_slice %8 {offsets = [1, 0], sizes = [8, 256], strides = [1, 1]} : vector<16x256xbf16> to vector<8x256xbf16>
    %11 = vector.extract_strided_slice %8 {offsets = [2, 0], sizes = [8, 256], strides = [1, 1]} : vector<16x256xbf16> to vector<8x256xbf16>
    %12 = tpu.concatenate %9, %10, %11 in 1 : vector<8x256xbf16>, vector<8x256xbf16>, vector<8x256xbf16> -> vector<8x768xbf16>
    %c0_7 = arith.constant 0 : index
    %c0_8 = arith.constant 0 : index
    %13 = vector.load %arg4[%c0_7, %c0_8] : memref<768x512xbf16, #tpu.memory_space<vmem>>, vector<768x512xbf16>
    %cst_9 = arith.constant dense<0.000000e+00> : vector<8x512xf32>
    %14 = tpu.matmul %12, %13, %cst_9 {dimension_numbers = #tpu.dot_dimension_numbers<[1], [0], [0], [1], [0, 0, 1, 1], [], []>} : vector<8x768xbf16>, vector<768x512xbf16>, vector<8x512xf32> -> vector<8x512xf32>
    %c0_10 = arith.constant 0 : index
    %c0_11 = arith.constant 0 : index
    %15 = vector.load %arg5[%c0_10, %c0_11] : memref<1x512xf32, #tpu.memory_space<vmem>>, vector<1x512xf32>
    %16 = vector.broadcast %15 : vector<1x512xf32> to vector<8x512xf32>
    %17 = arith.addf %14, %16 : vector<8x512xf32>
    %cst_12 = arith.constant 0.000000e+00 : f32
    %18 = vector.broadcast %cst_12 : f32 to vector<8x512xf32>
    %19 = arith.maximumf %17, %18 : vector<8x512xf32>
    %20 = vector.shape_cast %19 : vector<8x512xf32> to vector<4x2x512xf32>
    %cst_13 = arith.constant dense<0xFF800000> : vector<4x512xf32>
    %21 = vector.multi_reduction <maximumf>, %20, %cst_13 [1] : vector<4x2x512xf32> to vector<4x512xf32>
    %c0_14 = arith.constant 0 : index
    %c0_15 = arith.constant 0 : index
    %c0_16 = arith.constant 0 : index
    %22 = vector.load %arg6[%c0_14, %c0_15, %c0_16] : memref<1x4x512xf32, #tpu.memory_space<vmem>>, vector<1x4x512xf32>
    %23 = vector.shape_cast %22 : vector<1x4x512xf32> to vector<4x512xf32>
    %24 = vector.shape_cast %21 : vector<4x512xf32> to vector<1x4x512xf32>
    tpu.vector_store %arg6[%c0_14, %c0_15, %c0_16], %24 {strides = array<i32>} : memref<1x4x512xf32, #tpu.memory_space<vmem>>, vector<1x4x512xf32>,
    return
  }
  func.func @transform_0(%arg0: i32, %arg1: i32) -> (i32, i32, i32, i32) {
    %c0_i32 = arith.constant 0 : i32
    %c0_i32_0 = arith.constant 0 : i32
    %c0_i32_1 = arith.constant 0 : i32
    return %arg0, %arg1, %c0_i32, %c0_i32_0 : i32, i32, i32, i32
  }
  func.func @transform_1(%arg0: i32, %arg1: i32) -> (i32, i32) {
    %c0_i32 = arith.constant 0 : i32
    %c0_i32_0 = arith.constant 0 : i32
    %c0_i32_1 = arith.constant 0 : i32
    return %c0_i32, %c0_i32_0 : i32, i32
  }
  func.func @transform_2(%arg0: i32, %arg1: i32) -> (i32, i32) {
    %c0_i32 = arith.constant 0 : i32
    %c0_i32_0 = arith.constant 0 : i32
    %c0_i32_1 = arith.constant 0 : i32
    return %c0_i32, %c0_i32_0 : i32, i32
  }
  func.func @transform_3(%arg0: i32, %arg1: i32) -> (i32, i32) {
    %c0_i32 = arith.constant 0 : i32
    %c0_i32_0 = arith.constant 0 : i32
    %c0_i32_1 = arith.constant 0 : i32
    return %c0_i32, %c0_i32_0 : i32, i32
  }
  func.func @transform_4(%arg0: i32, %arg1: i32) -> (i32, i32, i32) {
    %c0_i32 = arith.constant 0 : i32
    %c0_i32_0 = arith.constant 0 : i32
    return %arg0, %arg1, %c0_i32 : i32, i32, i32
  }
}

</mosaic_0001>

<llo_original>
// kernel: tpu_custom_call.1
$region0: #{tpu_custom_call.1}
  #allocation0 [shape = 'u32[]', space=smem, size = 0x4, offset = 0x4, fixed_abs, tag = 'smem constant byte address 0x4 - core index']
  #allocation1 [shape = 'u32[144,128]{1,0:T(1,128)}', space=vmem, size = 0x12000, scoped, tag = 'internal scratch']
  %s0 = inlined_call_operand.hbm [shape: bf16[2,1,32,32], index: 0, kind: input, shape index: {}]
  %s1 = inlined_call_operand.hbm [shape: bf16[32,256], index: 1, kind: input, shape index: {}]
  %s2 = inlined_call_operand.hbm [shape: bf16[768,512], index: 2, kind: input, shape index: {}]
  %s3 = inlined_call_operand.vmem [shape: f32[1,512], index: 3, kind: input, shape index: {}]
  %s4 = inlined_call_operand.hbm [shape: f32[2,4,512], index: 4, kind: output, shape index: {}]
  %s5 = sld [smem:[#allocation0]]
  $region61: #{tpu_custom_call.1} parent=0
    _
  %s7 = ssub.s32 1, %s5
  %s8 = scalar_select 0, %s7, %s5
  $region1: #{tpu_custom_call.1} parent=0
    #allocation2 [shape = 'u8[16384]{0}', space=vmem, size = 0x4000, scoped, tag = 'input window, operand 0']
    #allocation3 [shape = 's32[2]{0}', space=sflag, size = 0x8, scoped, tag = 'scoped memory for tpu_custom_call.1']
    #allocation4 [shape = 's32[2]{0}', space=sflag, size = 0x8, scoped, tag = 'scoped memory for tpu_custom_call.1']
    #allocation5 [shape = 'u8[16384]{0}', space=vmem, size = 0x4000, scoped, tag = 'input window, operand 1, single buffered']
    #allocation6 [shape = 's32[1]{0}', space=sflag, size = 0x4, scoped, tag = 'scoped memory for tpu_custom_call.1']
    #allocation7 [shape = 'u8[786432]{0}', space=vmem, size = 0xc0000, scoped, tag = 'input window, operand 2, single buffered']
    #allocation8 [shape = 'u8[16384]{0}', space=vmem, size = 0x4000, scoped, tag = 'output window, operand 0']
    %9 = vsyncpa [#allocation3], 0
    %s10 = scalar_lea.sflag [#allocation3], 1
    %11 = vsyncpa %s10, 0
    %12 = vsyncpa [#allocation6], 0
    %13 = vsyncpa [#allocation4], 0
    %s14 = scalar_lea.sflag [#allocation4], 1
    %15 = vsyncpa %s14, 0
    loop: start=0, step=1, limit=4
    $region2: #{tpu_custom_call.1} parent=1 // loop_pre_header
      _
    $region3: #{tpu_custom_call.1} parent=1 // loop_header
      %s17 = sphi 0, %s21
      %p18 = scmp.ge.s32.totalorder %s17, 4
      %s24 = sphi 0, %s36
      %s25 = sphi 0, %s32
      %s26 = sphi 0, %s24
      %s27 = sphi 0, %s25
      %s28 = sphi 0, %s26
      %s29 = sphi 0, %s27
      %s41 = sphi 0, %s43
      %s44 = sphi 0, %s41
      %s45 = sphi 0, %s44
      %s61 = sphi 0, %s45
      %s65 = sphi 0, %s65
      %s67 = sphi 0, %s65
      %s68 = sphi 0, %s67
      %s82 = sphi 0, %s68
      %s86 = sphi 0, %s86
      %s88 = sphi 0, %s86
      %s89 = sphi 0, %s88
      %s103 = sphi 0, %s89
      %s107 = sphi 0, %s107
      %s109 = sphi 0, %s107
      %s110 = sphi 0, %s109
      %s124 = sphi 0, %s110
      %s132 = sphi 0, %s134
      %s135 = sphi 0, %s132
      %s136 = sphi 0, %s135
      %s152 = sphi 0, %s136
    $region4: #{tpu_custom_call.1} parent=1 // loop_header_branch
      %20 = sbr.rel (%p18) target = $region8
    $region5: #{tpu_custom_call.1} parent=1 // loop_body
      %s22 = ssub.s32 %s17, 1
      %s23 = ssub.s32 %s17, 2
      %s30 = sadd.s32 1, %s25
      %p31 = scmp.ge.s32.totalorder %s30, 1
      %s32 = scalar_select %p31, 0, %s30
      %s33 = sadd.s32 1, %s24
      %s34 = scalar_select %p31, %s33, %s24
      %p35 = scmp.ge.s32.totalorder %s34, 2
      %s36 = scalar_select %p35, 0, %s34
      %s37 = ssub.s32 %s24, %s36
      %s38 = ssub.s32 %s25, %s32
      %s39 = sor.u32 %s37, %s38
      %p40 = scmp.eq.s32.totalorder %s39, 0
      %s42 = sadd.s32 %s41, 1
      %s43 = scalar_select %p40, %s41, %s42
      %p46 = pneg %p40
      %p47 = scmp.eq.s32.totalorder %s17, 1
      %p48 = por %p46, %p47
      %p49 = scmp.ne.s32.totalorder %s41, %s44
      %p50 = scmp.eq.s32.totalorder %s17, 0
      %p51 = por %p49, %p50
      %p52 = scmp.ne.s32.totalorder %s41, %s44
      %p53 = scmp.eq.s32.totalorder %s22, 1
      %p54 = por %p52, %p53
      %p55 = scmp.ne.s32.totalorder %s44, %s45
      %p56 = scmp.eq.s32.totalorder %s22, 0
      %p57 = por %p55, %p56
      %p58 = scmp.ne.s32.totalorder %s44, %s45
      %p59 = scmp.eq.s32.totalorder %s23, 1
      %p60 = por %p58, %p59
      %p62 = scmp.ne.s32.totalorder %s45, %s61
      %p63 = scmp.eq.s32.totalorder %s23, 0
      %p64 = por %p62, %p63
      %s66 = sadd.s32 %s65, 1
      %p69 = scmp.eq.s32.totalorder %s17, 1
      %p70 = scmp.ne.s32.totalorder %s65, %s67
      %p71 = scmp.eq.s32.totalorder %s17, 0
      %p72 = por %p70, %p71
      %p73 = scmp.ne.s32.totalorder %s65, %s67
      %p74 = scmp.eq.s32.totalorder %s22, 1
      %p75 = por %p73, %p74
      %p76 = scmp.ne.s32.totalorder %s67, %s68
      %p77 = scmp.eq.s32.totalorder %s22, 0
      %p78 = por %p76, %p77
      %p79 = scmp.ne.s32.totalorder %s67, %s68
      %p80 = scmp.eq.s32.totalorder %s23, 1
      %p81 = por %p79, %p80
      %p83 = scmp.ne.s32.totalorder %s68, %s82
      %p84 = scmp.eq.s32.totalorder %s23, 0
      %p85 = por %p83, %p84
      %s87 = sadd.s32 %s86, 1
      %p90 = scmp.eq.s32.totalorder %s17, 1
      %p91 = scmp.ne.s32.totalorder %s86, %s88
      %p92 = scmp.eq.s32.totalorder %s17, 0
      %p93 = por %p91, %p92
      %p94 = scmp.ne.s32.totalorder %s86, %s88
      %p95 = scmp.eq.s32.totalorder %s22, 1
      %p96 = por %p94, %p95
      %p97 = scmp.ne.s32.totalorder %s88, %s89
      %p98 = scmp.eq.s32.totalorder %s22, 0
      %p99 = por %p97, %p98
      %p100 = scmp.ne.s32.totalorder %s88, %s89
      %p101 = scmp.eq.s32.totalorder %s23, 1
      %p102 = por %p100, %p101
      %p104 = scmp.ne.s32.totalorder %s89, %s103
      %p105 = scmp.eq.s32.totalorder %s23, 0
      %p106 = por %p104, %p105
      %s108 = sadd.s32 %s107, 1
      %p111 = scmp.eq.s32.totalorder %s17, 1
      %p112 = scmp.ne.s32.totalorder %s107, %s109
      %p113 = scmp.eq.s32.totalorder %s17, 0
      %p114 = por %p112, %p113
      %p115 = scmp.ne.s32.totalorder %s107, %s109
      %p116 = scmp.eq.s32.totalorder %s22, 1
      %p117 = por %p115, %p116
      %p118 = scmp.ne.s32.totalorder %s109, %s110
      %p119 = scmp.eq.s32.totalorder %s22, 0
      %p120 = por %p118, %p119
      %p121 = scmp.ne.s32.totalorder %s109, %s110
      %p122 = scmp.eq.s32.totalorder %s23, 1
      %p123 = por %p121, %p122
      %p125 = scmp.ne.s32.totalorder %s110, %s124
      %p126 = scmp.eq.s32.totalorder %s23, 0
      %p127 = por %p125, %p126
      %s128 = ssub.s32 %s24, %s36
      %s129 = ssub.s32 %s25, %s32
      %s130 = sor.u32 %s128, %s129
      %p131 = scmp.eq.s32.totalorder %s130, 0
      %s133 = sadd.s32 %s132, 1
      %s134 = scalar_select %p131, %s132, %s133
      %p137 = pneg %p131
      %p138 = scmp.eq.s32.totalorder %s17, 1
      %p139 = por %p137, %p138
      %p140 = scmp.ne.s32.totalorder %s132, %s135
      %p141 = scmp.eq.s32.totalorder %s17, 0
      %p142 = por %p140, %p141
      %p143 = scmp.ne.s32.totalorder %s132, %s135
      %p144 = scmp.eq.s32.totalorder %s22, 1
      %p145 = por %p143, %p144
      %p146 = scmp.ne.s32.totalorder %s135, %s136
      %p147 = scmp.eq.s32.totalorder %s22, 0
      %p148 = por %p146, %p147
      %p149 = scmp.ne.s32.totalorder %s135, %s136
      %p150 = scmp.eq.s32.totalorder %s23, 1
      %p151 = por %p149, %p150
      %p153 = scmp.ne.s32.totalorder %s136, %s152
      %p154 = scmp.eq.s32.totalorder %s23, 0
      %p155 = por %p153, %p154
      %p156 = scmp.le.s32.totalorder 1, %s17
      %p157 = scmp.lt.s32.totalorder %s17, 3
      %p158 = pnand %p156, %p157
      %p159 = pneg %p158
      // Predicated region
      $region9: #{tpu_custom_call.1} parent=5 // pred_check
        _
      $region10: #{tpu_custom_call.1} parent=5 // pred_check_branch
        %161 = sbr.rel (%p158) target = $region12
      $region11: #{tpu_custom_call.1} parent=5 // pred_region
        %s162 = ssub.s32 %s17, 1
        // Predicated region
        $region13: #{tpu_custom_call.1} parent=11 // pred_check
          %p163 = pneg %p78
        $region14: #{tpu_custom_call.1} parent=11 // pred_check_branch
          %165 = sbr.rel (%p163) target = $region16
        $region15: #{tpu_custom_call.1} parent=11 // pred_region
          %s167 = ssub.s32 512, 512
          %168 = vsyncadd [#allocation6], %s167
          %s169 = sshll.u32 [#allocation5], 4
          %s170 = int_to_ptr.vmem [resolvable:$true] %s169
          %175 = dma.hbm_to_vmem [thread:$0]  %s1, 512, %s170, [#allocation6], 128, 128, 8
        $region16: #{tpu_custom_call.1} parent=11 // pred_fallthru
          _
        // Predicated region
        $region17: #{tpu_custom_call.1} parent=11 // pred_check
          %p176 = pneg %p99
        $region18: #{tpu_custom_call.1} parent=11 // pred_check_branch
          %178 = sbr.rel (%p176) target = $region20
        $region19: #{tpu_custom_call.1} parent=11 // pred_region
          %s180 = ssub.s32 24576, 24576
          %181 = vsyncadd [#allocation6], %s180
          %s182 = sshll.u32 [#allocation7], 4
          %s183 = int_to_ptr.vmem [resolvable:$true] %s182
          %188 = dma.hbm_to_vmem [thread:$0]  %s2, 24576, %s183, [#allocation6], 256, 256, 16
        $region20: #{tpu_custom_call.1} parent=11 // pred_fallthru
          _
        // Predicated region
        $region21: #{tpu_custom_call.1} parent=11 // pred_check
          %p189 = pneg %p120
        $region22: #{tpu_custom_call.1} parent=11 // pred_check_branch
          %191 = sbr.rel (%p189) target = $region24
        $region23: #{tpu_custom_call.1} parent=11 // pred_region
          _
        $region24: #{tpu_custom_call.1} parent=11 // pred_fallthru
          _
      $region12: #{tpu_custom_call.1} parent=5 // pred_fallthru
        _
      %p192 = scmp.lt.s32.totalorder %s17, 2
      // Predicated region
      $region25: #{tpu_custom_call.1} parent=5 // pred_check
        %p193 = pneg %p192
      $region26: #{tpu_custom_call.1} parent=5 // pred_check_branch
        %195 = sbr.rel (%p193) target = $region28
      $region27: #{tpu_custom_call.1} parent=5 // pred_region
        // Predicated region
        $region29: #{tpu_custom_call.1} parent=27 // pred_check
          %p196 = pneg %p51
        $region30: #{tpu_custom_call.1} parent=27 // pred_check_branch
          %198 = sbr.rel (%p196) target = $region32
        $region31: #{tpu_custom_call.1} parent=27 // pred_region
          %s199 = sand.u32 %s41, 1
          %s200 = scalar_lea.sflag [#allocation3], %s199
          %s201 = sand.u32 %s41, 1
          %s202 = smul.addr %s201, 16
          %s203 = scalar_lea.vmem [#allocation2], %s202
          %s205 = ssub.s32 256, 256
          %206 = vsyncadd %s200, %s205
          %s207 = smul.addr %s25, 4
          %s208 = smul.addr %s24, 4
          %s209 = sadd.s32 %s207, %s208
          %s210 = smul.addr %s209, 64
          %s211 = scalar_lea.hbm %s0, %s210
          %s212 = sshll.u32 %s203, 4
          %s213 = int_to_ptr.vmem [resolvable:$true] %s212
          %218 = dma.hbm_to_vmem [thread:$0]  %s211, 256, %s213, %s200, 64, 64, 4
        $region32: #{tpu_custom_call.1} parent=27 // pred_fallthru
          _
      $region28: #{tpu_custom_call.1} parent=5 // pred_fallthru
        _
      %p219 = scmp.le.s32.totalorder 1, %s17
      %p220 = scmp.lt.s32.totalorder %s17, 3
      %p221 = pnand %p219, %p220
      %p222 = pneg %p221
      // Predicated region
      $region33: #{tpu_custom_call.1} parent=5 // pred_check
        _
      $region34: #{tpu_custom_call.1} parent=5 // pred_check_branch
        %224 = sbr.rel (%p221) target = $region36
      $region35: #{tpu_custom_call.1} parent=5 // pred_region
        %s225 = ssub.s32 %s17, 1
        %s226 = sand.u32 %s44, 1
        %s227 = scalar_lea.sflag [#allocation3], %s226
        %s228 = sand.u32 %s44, 1
        %s229 = smul.addr %s228, 16
        %s230 = scalar_lea.vmem [#allocation2], %s229
        // Predicated region
        $region37: #{tpu_custom_call.1} parent=35 // pred_check
          %p231 = pneg %p57
        $region38: #{tpu_custom_call.1} parent=35 // pred_check_branch
          %233 = sbr.rel (%p231) target = $region40
        $region39: #{tpu_custom_call.1} parent=35 // pred_region
          %234 = dma.done %s227, 256
        $region40: #{tpu_custom_call.1} parent=35 // pred_fallthru
          _
        // Predicated region
        $region41: #{tpu_custom_call.1} parent=35 // pred_check
          %p235 = pneg %p78
        $region42: #{tpu_custom_call.1} parent=35 // pred_check_branch
          %237 = sbr.rel (%p235) target = $region44
        $region43: #{tpu_custom_call.1} parent=35 // pred_region
          %238 = dma.done [#allocation6], 512
        $region44: #{tpu_custom_call.1} parent=35 // pred_fallthru
          _
        // Predicated region
        $region45: #{tpu_custom_call.1} parent=35 // pred_check
          %p239 = pneg %p99
        $region46: #{tpu_custom_call.1} parent=35 // pred_check_branch
          %241 = sbr.rel (%p239) target = $region48
        $region47: #{tpu_custom_call.1} parent=35 // pred_region
          %242 = dma.done [#allocation6], 24576
        $region48: #{tpu_custom_call.1} parent=35 // pred_fallthru
          _
        %s243 = sand.u32 %s44, 1
        %s244 = scalar_lea.sflag [#allocation3], %s243
        %s245 = sand.u32 %s44, 1
        %s246 = smul.addr %s245, 16
        %s247 = scalar_lea.vmem [#allocation2], %s246
        %p248 = pneg %p57
        %p249 = pneg %p54
        %p250 = pneg %p78
        %p251 = pneg %p75
        %p252 = pneg %p99
        %p253 = pneg %p96
        %p254 = pneg %p120
        %p255 = pneg %p117
        %p256 = pneg %p148
        %p257 = pneg %p145
        %s258 = sand.u32 %s135, 1
        %s259 = scalar_lea.sflag [#allocation4], %s258
        %s260 = sand.u32 %s135, 1
        %s261 = smul.addr %s260, 16
        %s262 = scalar_lea.vmem [#allocation8], %s261
        %v265 = vld [vmem:[%s230] sm:$0xf]
        %v266 = vld [vmem:[%s230 + $0x4] sm:$0xf]
        %v267 = vld [vmem:[%s230 + $0x8] sm:$0xf]
        %v268 = vld [vmem:[%s230 + $0xc] sm:$0xf]
        %v269 = vld [vmem:[#allocation5] sm:$0xff]
        %v270 = vld [vmem:[#allocation5 + $0x8] sm:$0xff]
        %v271 = vld [vmem:[#allocation5 + $0x10] sm:$0xff]
        %v272 = vld [vmem:[#allocation5 + $0x18] sm:$0xff]
        %v277 = vunpack.c.l.b16 %v265
        %v278 = vunpack.c.l.b16 %v266
        %v279 = vunpack.c.l.b16 %v267
        %v280 = vunpack.c.l.b16 %v268
        %v281 = vpack.c.b16 %v278, %v277
        %v282 = vpack.c.b16 %v280, %v279
        %v287 = vunpack.c.l.b16 %v269
        %v288 = vunpack.c.h.b16 %v269
        %v289 = vunpack.c.l.b16 %v270
        %v290 = vunpack.c.h.b16 %v270
        %v291 = vunpack.c.l.b16 %v271
        %v292 = vunpack.c.h.b16 %v271
        %v293 = vunpack.c.l.b16 %v272
        %v294 = vunpack.c.h.b16 %v272
        %v295 = vpack.c.b16 %v289, %v287
        %v296 = vpack.c.b16 %v290, %v288
        %v297 = vpack.c.b16 %v293, %v291
        %v298 = vpack.c.b16 %v294, %v292
        %vm303 = vcmask 261120
        %v305 = vsel %vm303, %v281, 0
        %v308 = vsel %vm303, %v282, 0
        %310 = vmatprep.subr.bf16.mxu0 0
        %311 = vmatpush1.bf16.msra.mxu0 0
        %312 = vmatprep.subr.bf16.mxu0 0
        %313 = vmatpush1.bf16.msra.mxu0 0
        %314 = vmatprep.subr.bf16.mxu0 0
        %315 = vmatpush1.bf16.msra.mxu0 0
        %316 = vmatprep.subr.bf16.mxu0 0
        %317 = vmatpush1.bf16.msra.mxu0 0
        %318 = vmatprep.subr.bf16.mxu0 0
        %319 = vmatpush1.bf16.msra.mxu0 0
        %320 = vmatprep.subr.bf16.mxu0 0
        %321 = vmatpush1.bf16.msra.mxu0 0
        %322 = vmatprep.subr.bf16.mxu0 %v298
        %323 = vmatpush1.bf16.msra.mxu0 %v297
        %324 = vmatprep.subr.bf16.mxu0 %v296
        %325 = vmatpush1.bf16.msra.mxu0 %v295
        %326 = vmatprep.subr.bf16.mxu0 0
        %327 = vmatpush2.bf16.msra.mxu0 0
        %328 = vmatprep.subr.bf16.mxu0 0
        %329 = vmatpush2.bf16.msra.mxu0 0
        %330 = vmatprep.subr.bf16.mxu0 0
        %331 = vmatpush2.bf16.msra.mxu0 0
        %332 = vmatprep.subr.bf16.mxu0 0
        %333 = vmatpush2.bf16.msra.mxu0 0
        %334 = vmatprep.subr.bf16.mxu0 0
        %335 = vmatpush2.bf16.msra.mxu0 0
        %336 = vmatprep.subr.bf16.mxu0 0
        %337 = vmatpush2.bf16.msra.mxu0 0
        %338 = vmatprep.subr.bf16.mxu0 0
        %339 = vmatpush2.bf16.msra.mxu0 0
        %340 = vmatprep.subr.bf16.mxu0 0
        %341 = vmatpush2.bf16.msra.mxu0 0
        %342 = vmatprep.mubr.bf16.mxu0 0
        %343 = vmatmul.mubr.bf16.gmra.mxu0 %v305
        %v344 = vpop.f32.mrf.mxu0
        %v345 = vadd.f32 0.0, %v344
        %v346 = vpop.f32.mrf.mxu0
        %v347 = vadd.f32 0.0, %v346
        %v348 = vpop.f32.mrf.mxu0
        %v349 = vadd.f32 0.0, %v348
        %v350 = vpop.f32.mrf.mxu0
        %v351 = vadd.f32 0.0, %v350
        %352 = vmatprep.mubr.bf16.mxu0 0
        %353 = vmatmul.mubr.bf16.gmra.mxu0 %v308
        %v354 = vpop.f32.mrf.mxu0
        %v355 = vadd.f32 0.0, %v354
        %v356 = vpop.f32.mrf.mxu0
        %v357 = vadd.f32 0.0, %v356
        %v358 = vpop.f32.mrf.mxu0
        %v359 = vadd.f32 0.0, %v358
        %v360 = vpop.f32.mrf.mxu0
        %v361 = vadd.f32 0.0, %v360
        %362 = vdwg.mxu0
        %v363 = vpack.c.bf16 %v349, %v345
        %v364 = vpack.c.bf16 %v351, %v347
        %v365 = vpack.c.bf16 %v359, %v355
        %v366 = vpack.c.bf16 %v361, %v357
        %v367 = vmax.bf16 %v363, 0
        %v368 = vmax.bf16 %v364, 0
        %v369 = vmax.bf16 %v365, 0
        %v370 = vmax.bf16 %v366, 0
        %v375 = vcombine.low %v367, %v368
        %v376 = vcombine.high %v367, %v368
        %v378 = vunpack.c.l.s4 1966171168
        %v379 = vunpack.c.0.s8 %v378
        %v380 = vlaneseq
        %v381 = vshrl.u32 %v380, 7
        %v382 = vsub.s32 %v379, %v381
        %v383 = vrot.slane %v375, %v382
        %v385 = vunpack.c.l.s4 1966171168
        %v386 = vunpack.c.0.s8 %v385
        %v387 = vlaneseq
        %v388 = vshrl.u32 %v387, 7
        %v389 = vsub.s32 %v386, %v388
        %v390 = vrot.slane %v376, %v389
        %v391 = vcombine.high %v383, %v383
        %v392 = vcombine.high %v390, %v390
        %v394 = vunpack.c.l.s4 1966171168
        %v395 = vunpack.c.0.s8 %v394
        %v396 = vlaneseq
        %v397 = vshrl.u32 %v396, 7
        %v398 = vsub.s32 %v395, %v397
        %v399 = vrot.slane %v383, %v398
        %v401 = vunpack.c.l.s4 1966171168
        %v402 = vunpack.c.0.s8 %v401
        %v403 = vlaneseq
        %v404 = vshrl.u32 %v403, 7
        %v405 = vsub.s32 %v402, %v404
        %v406 = vrot.slane %v390, %v405
        %v408 = vunpack.c.l.s4 1966171168
        %v409 = vunpack.c.0.s8 %v408
        %v410 = vlaneseq
        %v411 = vshrl.u32 %v410, 7
        %v412 = vsub.s32 %v409, %v411
        %v413 = vrot.slane %v391, %v412
        %v415 = vunpack.c.l.s4 1966171168
        %v416 = vunpack.c.0.s8 %v415
        %v417 = vlaneseq
        %v418 = vshrl.u32 %v417, 7
        %v419 = vsub.s32 %v416, %v418
        %v420 = vrot.slane %v392, %v419
        %v421 = vcombine.high %v399, %v399
        %v422 = vcombine.high %v406, %v406
        %v423 = vcombine.high %v413, %v413
        %v424 = vcombine.high %v420, %v420
        %v425 = vcombine.low %v369, %v370
        %v427 = vunpack.c.l.s4 1966171168
        %v428 = vunpack.c.0.s8 %v427
        %v429 = vlaneseq
        %v430 = vshrl.u32 %v429, 7
        %v431 = vsub.s32 %v428, %v430
        %v432 = vrot.slane %v425, %v431
        %v433 = vcombine.high %v432, %v432
        %v435 = vunpack.c.l.s4 1966171168
        %v436 = vunpack.c.0.s8 %v435
        %v437 = vlaneseq
        %v438 = vshrl.u32 %v437, 7
        %v439 = vsub.s32 %v436, %v438
        %v440 = vrot.slane %v432, %v439
        %v442 = vunpack.c.l.s4 1966171168
        %v443 = vunpack.c.0.s8 %v442
        %v444 = vlaneseq
        %v445 = vshrl.u32 %v444, 7
        %v446 = vsub.s32 %v443, %v445
        %v447 = vrot.slane %v433, %v446
        %v449 = vunpack.c.l.s4 1966171168
        %v450 = vunpack.c.0.s8 %v449
        %v451 = vlaneseq
        %v452 = vshrl.u32 %v451, 7
        %v453 = vsub.s32 %v450, %v452
        %v454 = vrot.slane %v399, %v453
        %v455 = vcombine.high %v454, %v454
        %v457 = vunpack.c.l.s4 1966171168
        %v458 = vunpack.c.0.s8 %v457
        %v459 = vlaneseq
        %v460 = vshrl.u32 %v459, 7
        %v461 = vsub.s32 %v458, %v460
        %v462 = vrot.slane %v454, %v461
        %v464 = vunpack.c.l.s4 1966171168
        %v465 = vunpack.c.0.s8 %v464
        %v466 = vlaneseq
        %v467 = vshrl.u32 %v466, 7
        %v468 = vsub.s32 %v465, %v467
        %v469 = vrot.slane %v455, %v468
        %v471 = vunpack.c.l.s4 1966171168
        %v472 = vunpack.c.0.s8 %v471
        %v473 = vlaneseq
        %v474 = vshrl.u32 %v473, 7
        %v475 = vsub.s32 %v472, %v474
        %v476 = vrot.slane %v413, %v475
        %v477 = vcombine.high %v476, %v476
        %v479 = vunpack.c.l.s4 1966171168
        %v480 = vunpack.c.0.s8 %v479
        %v481 = vlaneseq
        %v482 = vshrl.u32 %v481, 7
        %v483 = vsub.s32 %v480, %v482
        %v484 = vrot.slane %v476, %v483
        %v486 = vunpack.c.l.s4 1966171168
        %v487 = vunpack.c.0.s8 %v486
        %v488 = vlaneseq
        %v489 = vshrl.u32 %v488, 7
        %v490 = vsub.s32 %v487, %v489
        %v491 = vrot.slane %v477, %v490
        %v493 = vunpack.c.l.s4 1966171168
        %v494 = vunpack.c.0.s8 %v493
        %v495 = vlaneseq
        %v496 = vshrl.u32 %v495, 7
        %v497 = vsub.s32 %v494, %v496
        %v498 = vrot.slane %v421, %v497
        %v499 = vcombine.high %v498, %v498
        %v501 = vunpack.c.l.s4 1966171168
        %v502 = vunpack.c.0.s8 %v501
        %v503 = vlaneseq
        %v504 = vshrl.u32 %v503, 7
        %v505 = vsub.s32 %v502, %v504
        %v506 = vrot.slane %v498, %v505
        %v508 = vunpack.c.l.s4 1966171168
        %v509 = vunpack.c.0.s8 %v508
        %v510 = vlaneseq
        %v511 = vshrl.u32 %v510, 7
        %v512 = vsub.s32 %v509, %v511
        %v513 = vrot.slane %v499, %v512
        %v515 = vunpack.c.l.s4 1966171168
        %v516 = vunpack.c.0.s8 %v515
        %v517 = vlaneseq
        %v518 = vshrl.u32 %v517, 7
        %v519 = vsub.s32 %v516, %v518
        %v520 = vrot.slane %v423, %v519
        %v521 = vcombine.high %v520, %v520
        %v523 = vunpack.c.l.s4 1966171168
        %v524 = vunpack.c.0.s8 %v523
        %v525 = vlaneseq
        %v526 = vshrl.u32 %v525, 7
        %v527 = vsub.s32 %v524, %v526
        %v528 = vrot.slane %v520, %v527
        %v530 = vunpack.c.l.s4 1966171168
        %v531 = vunpack.c.0.s8 %v530
        %v532 = vlaneseq
        %v533 = vshrl.u32 %v532, 7
        %v534 = vsub.s32 %v531, %v533
        %v535 = vrot.slane %v521, %v534
        %v537 = vunpack.c.l.s4 1966171168
        %v538 = vunpack.c.0.s8 %v537
        %v539 = vlaneseq
        %v540 = vshrl.u32 %v539, 7
        %v541 = vsub.s32 %v538, %v540
        %v542 = vrot.slane %v406, %v541
        %v543 = vcombine.high %v542, %v542
        %v545 = vunpack.c.l.s4 1966171168
        %v546 = vunpack.c.0.s8 %v545
        %v547 = vlaneseq
        %v548 = vshrl.u32 %v547, 7
        %v549 = vsub.s32 %v546, %v548
        %v550 = vrot.slane %v542, %v549
        %v552 = vunpack.c.l.s4 1966171168
        %v553 = vunpack.c.0.s8 %v552
        %v554 = vlaneseq
        %v555 = vshrl.u32 %v554, 7
        %v556 = vsub.s32 %v553, %v555
        %v557 = vrot.slane %v543, %v556
        %v559 = vunpack.c.l.s4 1966171168
        %v560 = vunpack.c.0.s8 %v559
        %v561 = vlaneseq
        %v562 = vshrl.u32 %v561, 7
        %v563 = vsub.s32 %v560, %v562
        %v564 = vrot.slane %v420, %v563
        %v565 = vcombine.high %v564, %v564
        %v567 = vunpack.c.l.s4 1966171168
        %v568 = vunpack.c.0.s8 %v567
        %v569 = vlaneseq
        %v570 = vshrl.u32 %v569, 7
        %v571 = vsub.s32 %v568, %v570
        %v572 = vrot.slane %v564, %v571
        %v574 = vunpack.c.l.s4 1966171168
        %v575 = vunpack.c.0.s8 %v574
        %v576 = vlaneseq
        %v577 = vshrl.u32 %v576, 7
        %v578 = vsub.s32 %v575, %v577
        %v579 = vrot.slane %v565, %v578
        %v581 = vunpack.c.l.s4 1966171168
        %v582 = vunpack.c.0.s8 %v581
        %v583 = vlaneseq
        %v584 = vshrl.u32 %v583, 7
        %v585 = vsub.s32 %v582, %v584
        %v586 = vrot.slane %v422, %v585
        %v587 = vcombine.high %v586, %v586
        %v589 = vunpack.c.l.s4 1966171168
        %v590 = vunpack.c.0.s8 %v589
        %v591 = vlaneseq
        %v592 = vshrl.u32 %v591, 7
        %v593 = vsub.s32 %v590, %v592
        %v594 = vrot.slane %v586, %v593
        %v596 = vunpack.c.l.s4 1966171168
        %v597 = vunpack.c.0.s8 %v596
        %v598 = vlaneseq
        %v599 = vshrl.u32 %v598, 7
        %v600 = vsub.s32 %v597, %v599
        %v601 = vrot.slane %v587, %v600
        %v603 = vunpack.c.l.s4 1966171168
        %v604 = vunpack.c.0.s8 %v603
        %v605 = vlaneseq
        %v606 = vshrl.u32 %v605, 7
        %v607 = vsub.s32 %v604, %v606
        %v608 = vrot.slane %v424, %v607
        %v609 = vcombine.high %v608, %v608
        %v611 = vunpack.c.l.s4 1966171168
        %v612 = vunpack.c.0.s8 %v611
        %v613 = vlaneseq
        %v614 = vshrl.u32 %v613, 7
        %v615 = vsub.s32 %v612, %v614
        %v616 = vrot.slane %v608, %v615
        %v618 = vunpack.c.l.s4 1966171168
        %v619 = vunpack.c.0.s8 %v618
        %v620 = vlaneseq
        %v621 = vshrl.u32 %v620, 7
        %v622 = vsub.s32 %v619, %v621
        %v623 = vrot.slane %v609, %v622
        %v625 = vunpack.c.l.s4 1966171168
        %v626 = vunpack.c.0.s8 %v625
        %v627 = vlaneseq
        %v628 = vshrl.u32 %v627, 7
        %v629 = vsub.s32 %v626, %v628
        %v630 = vrot.slane %v440, %v629
        %v631 = vcombine.high %v630, %v630
        %v633 = vunpack.c.l.s4 1966171168
        %v634 = vunpack.c.0.s8 %v633
        %v635 = vlaneseq
        %v636 = vshrl.u32 %v635, 7
        %v637 = vsub.s32 %v634, %v636
        %v638 = vrot.slane %v630, %v637
        %v640 = vunpack.c.l.s4 1966171168
        %v641 = vunpack.c.0.s8 %v640
        %v642 = vlaneseq
        %v643 = vshrl.u32 %v642, 7
        %v644 = vsub.s32 %v641, %v643
        %v645 = vrot.slane %v631, %v644
        %v647 = vunpack.c.l.s4 1966171168
        %v648 = vunpack.c.0.s8 %v647
        %v649 = vlaneseq
        %v650 = vshrl.u32 %v649, 7
        %v651 = vsub.s32 %v648, %v650
        %v652 = vrot.slane %v447, %v651
        %v653 = vcombine.high %v652, %v652
        %v655 = vunpack.c.l.s4 1966171168
        %v656 = vunpack.c.0.s8 %v655
        %v657 = vlaneseq
        %v658 = vshrl.u32 %v657, 7
        %v659 = vsub.s32 %v656, %v658
        %v660 = vrot.slane %v652, %v659
        %v662 = vunpack.c.l.s4 1966171168
        %v663 = vunpack.c.0.s8 %v662
        %v664 = vlaneseq
        %v665 = vshrl.u32 %v664, 7
        %v666 = vsub.s32 %v663, %v665
        %v667 = vrot.slane %v653, %v666
        %vm668 = vcmask 1040384
        %v671 = vsel %vm668, %v462, 4286644096
        %v673 = vunpack.i.l.bf16 %v671
        %v674 = vunpack.i.h.bf16 %v671
        %v675 = vmax.f32 %v673, %v674
        %v676 = vrot.slane %v675, 4
        %v677 = vmax.f32 %v675, %v676
        %v678 = vrot.slane %v677, 2
        %v679 = vmax.f32 %v677, %v678
        %v680 = vrot.slane %v679, 1
        %v681 = vmax.f32 %v679, %v680
        %v682 = vpack.i.bf16 %v681, %v681
        %v684 = vsel %vm668, %v469, 4286644096
        %v686 = vunpack.i.l.bf16 %v684
        %v687 = vunpack.i.h.bf16 %v684
        %v688 = vmax.f32 %v686, %v687
        %v689 = vrot.slane %v688, 4
        %v690 = vmax.f32 %v688, %v689
        %v691 = vrot.slane %v690, 2
        %v692 = vmax.f32 %v690, %v691
        %v693 = vrot.slane %v692, 1
        %v694 = vmax.f32 %v692, %v693
        %v695 = vpack.i.bf16 %v694, %v694
        %v697 = vsel %vm668, %v484, 4286644096
        %v699 = vunpack.i.l.bf16 %v697
        %v700 = vunpack.i.h.bf16 %v697
        %v701 = vmax.f32 %v699, %v700
        %v702 = vrot.slane %v701, 4
        %v703 = vmax.f32 %v701, %v702
        %v704 = vrot.slane %v703, 2
        %v705 = vmax.f32 %v703, %v704
        %v706 = vrot.slane %v705, 1
        %v707 = vmax.f32 %v705, %v706
        %v708 = vpack.i.bf16 %v707, %v707
        %v710 = vsel %vm668, %v491, 4286644096
        %v712 = vunpack.i.l.bf16 %v710
        %v713 = vunpack.i.h.bf16 %v710
        %v714 = vmax.f32 %v712, %v713
        %v715 = vrot.slane %v714, 4
        %v716 = vmax.f32 %v714, %v715
        %v717 = vrot.slane %v716, 2
        %v718 = vmax.f32 %v716, %v717
        %v719 = vrot.slane %v718, 1
        %v720 = vmax.f32 %v718, %v719
        %v721 = vpack.i.bf16 %v720, %v720
        %v723 = vsel %vm668, %v506, 4286644096
        %v725 = vunpack.i.l.bf16 %v723
        %v726 = vunpack.i.h.bf16 %v723
        %v727 = vmax.f32 %v725, %v726
        %v728 = vrot.slane %v727, 4
        %v729 = vmax.f32 %v727, %v728
        %v730 = vrot.slane %v729, 2
        %v731 = vmax.f32 %v729, %v730
        %v732 = vrot.slane %v731, 1
        %v733 = vmax.f32 %v731, %v732
        %v734 = vpack.i.bf16 %v733, %v733
        %v736 = vsel %vm668, %v513, 4286644096
        %v738 = vunpack.i.l.bf16 %v736
        %v739 = vunpack.i.h.bf16 %v736
        %v740 = vmax.f32 %v738, %v739
        %v741 = vrot.slane %v740, 4
        %v742 = vmax.f32 %v740, %v741
        %v743 = vrot.slane %v742, 2
        %v744 = vmax.f32 %v742, %v743
        %v745 = vrot.slane %v744, 1
        %v746 = vmax.f32 %v744, %v745
        %v747 = vpack.i.bf16 %v746, %v746
        %v749 = vsel %vm668, %v528, 4286644096
        %v751 = vunpack.i.l.bf16 %v749
        %v752 = vunpack.i.h.bf16 %v749
        %v753 = vmax.f32 %v751, %v752
        %v754 = vrot.slane %v753, 4
        %v755 = vmax.f32 %v753, %v754
        %v756 = vrot.slane %v755, 2
        %v757 = vmax.f32 %v755, %v756
        %v758 = vrot.slane %v757, 1
        %v759 = vmax.f32 %v757, %v758
        %v760 = vpack.i.bf16 %v759, %v759
        %v762 = vsel %vm668, %v535, 4286644096
        %v764 = vunpack.i.l.bf16 %v762
        %v765 = vunpack.i.h.bf16 %v762
        %v766 = vmax.f32 %v764, %v765
        %v767 = vrot.slane %v766, 4
        %v768 = vmax.f32 %v766, %v767
        %v769 = vrot.slane %v768, 2
        %v770 = vmax.f32 %v768, %v769
        %v771 = vrot.slane %v770, 1
        %v772 = vmax.f32 %v770, %v771
        %v773 = vpack.i.bf16 %v772, %v772
        %v775 = vsel %vm668, %v550, 4286644096
        %v777 = vunpack.i.l.bf16 %v775
        %v778 = vunpack.i.h.bf16 %v775
        %v779 = vmax.f32 %v777, %v778
        %v780 = vrot.slane %v779, 4
        %v781 = vmax.f32 %v779, %v780
        %v782 = vrot.slane %v781, 2
        %v783 = vmax.f32 %v781, %v782
        %v784 = vrot.slane %v783, 1
        %v785 = vmax.f32 %v783, %v784
        %v786 = vpack.i.bf16 %v785, %v785
        %v788 = vsel %vm668, %v557, 4286644096
        %v790 = vunpack.i.l.bf16 %v788
        %v791 = vunpack.i.h.bf16 %v788
        %v792 = vmax.f32 %v790, %v791
        %v793 = vrot.slane %v792, 4
        %v794 = vmax.f32 %v792, %v793
        %v795 = vrot.slane %v794, 2
        %v796 = vmax.f32 %v794, %v795
        %v797 = vrot.slane %v796, 1
        %v798 = vmax.f32 %v796, %v797
        %v799 = vpack.i.bf16 %v798, %v798
        %v801 = vsel %vm668, %v572, 4286644096
        %v803 = vunpack.i.l.bf16 %v801
        %v804 = vunpack.i.h.bf16 %v801
        %v805 = vmax.f32 %v803, %v804
        %v806 = vrot.slane %v805, 4
        %v807 = vmax.f32 %v805, %v806
        %v808 = vrot.slane %v807, 2
        %v809 = vmax.f32 %v807, %v808
        %v810 = vrot.slane %v809, 1
        %v811 = vmax.f32 %v809, %v810
        %v812 = vpack.i.bf16 %v811, %v811
        %v814 = vsel %vm668, %v579, 4286644096
        %v816 = vunpack.i.l.bf16 %v814
        %v817 = vunpack.i.h.bf16 %v814
        %v818 = vmax.f32 %v816, %v817
        %v819 = vrot.slane %v818, 4
        %v820 = vmax.f32 %v818, %v819
        %v821 = vrot.slane %v820, 2
        %v822 = vmax.f32 %v820, %v821
        %v823 = vrot.slane %v822, 1
        %v824 = vmax.f32 %v822, %v823
        %v825 = vpack.i.bf16 %v824, %v824
        %v827 = vsel %vm668, %v594, 4286644096
        %v829 = vunpack.i.l.bf16 %v827
        %v830 = vunpack.i.h.bf16 %v827
        %v831 = vmax.f32 %v829, %v830
        %v832 = vrot.slane %v831, 4
        %v833 = vmax.f32 %v831, %v832
        %v834 = vrot.slane %v833, 2
        %v835 = vmax.f32 %v833, %v834
        %v836 = vrot.slane %v835, 1
        %v837 = vmax.f32 %v835, %v836
        %v838 = vpack.i.bf16 %v837, %v837
        %v840 = vsel %vm668, %v601, 4286644096
        %v842 = vunpack.i.l.bf16 %v840
        %v843 = vunpack.i.h.bf16 %v840
        %v844 = vmax.f32 %v842, %v843
        %v845 = vrot.slane %v844, 4
        %v846 = vmax.f32 %v844, %v845
        %v847 = vrot.slane %v846, 2
        %v848 = vmax.f32 %v846, %v847
        %v849 = vrot.slane %v848, 1
        %v850 = vmax.f32 %v848, %v849
        %v851 = vpack.i.bf16 %v850, %v850
        %v853 = vsel %vm668, %v616, 4286644096
        %v855 = vunpack.i.l.bf16 %v853
        %v856 = vunpack.i.h.bf16 %v853
        %v857 = vmax.f32 %v855, %v856
        %v858 = vrot.slane %v857, 4
        %v859 = vmax.f32 %v857, %v858
        %v860 = vrot.slane %v859, 2
        %v861 = vmax.f32 %v859, %v860
        %v862 = vrot.slane %v861, 1
        %v863 = vmax.f32 %v861, %v862
        %v864 = vpack.i.bf16 %v863, %v863
        %v866 = vsel %vm668, %v623, 4286644096
        %v868 = vunpack.i.l.bf16 %v866
        %v869 = vunpack.i.h.bf16 %v866
        %v870 = vmax.f32 %v868, %v869
        %v871 = vrot.slane %v870, 4
        %v872 = vmax.f32 %v870, %v871
        %v873 = vrot.slane %v872, 2
        %v874 = vmax.f32 %v872, %v873
        %v875 = vrot.slane %v874, 1
        %v876 = vmax.f32 %v874, %v875
        %v877 = vpack.i.bf16 %v876, %v876
        %v879 = vsel %vm668, %v638, 4286644096
        %v881 = vunpack.i.l.bf16 %v879
        %v882 = vunpack.i.h.bf16 %v879
        %v883 = vmax.f32 %v881, %v882
        %v884 = vrot.slane %v883, 4
        %v885 = vmax.f32 %v883, %v884
        %v886 = vrot.slane %v885, 2
        %v887 = vmax.f32 %v885, %v886
        %v888 = vrot.slane %v887, 1
        %v889 = vmax.f32 %v887, %v888
        %v890 = vpack.i.bf16 %v889, %v889
        %v892 = vsel %vm668, %v645, 4286644096
        %v894 = vunpack.i.l.bf16 %v892
        %v895 = vunpack.i.h.bf16 %v892
        %v896 = vmax.f32 %v894, %v895
        %v897 = vrot.slane %v896, 4
        %v898 = vmax.f32 %v896, %v897
        %v899 = vrot.slane %v898, 2
        %v900 = vmax.f32 %v898, %v899
        %v901 = vrot.slane %v900, 1
        %v902 = vmax.f32 %v900, %v901
        %v903 = vpack.i.bf16 %v902, %v902
        %v905 = vsel %vm668, %v660, 4286644096
        %v907 = vunpack.i.l.bf16 %v905
        %v908 = vunpack.i.h.bf16 %v905
        %v909 = vmax.f32 %v907, %v908
        %v910 = vrot.slane %v909, 4
        %v911 = vmax.f32 %v909, %v910
        %v912 = vrot.slane %v911, 2
        %v913 = vmax.f32 %v911, %v912
        %v914 = vrot.slane %v913, 1
        %v915 = vmax.f32 %v913, %v914
        %v916 = vpack.i.bf16 %v915, %v915
        %v918 = vsel %vm668, %v667, 4286644096
        %v920 = vunpack.i.l.bf16 %v918
        %v921 = vunpack.i.h.bf16 %v918
        %v922 = vmax.f32 %v920, %v921
        %v923 = vrot.slane %v922, 4
        %v924 = vmax.f32 %v922, %v923
        %v925 = vrot.slane %v924, 2
        %v926 = vmax.f32 %v924, %v925
        %v927 = vrot.slane %v926, 1
        %v928 = vmax.f32 %v926, %v927
        %v929 = vpack.i.bf16 %v928, %v928
        %v946 = vunpack.c.l.b16 %v682
        %v947 = vunpack.c.l.b16 %v695
        %v948 = vunpack.c.l.b16 %v708
        %v949 = vunpack.c.l.b16 %v721
        %v950 = vunpack.c.l.b16 %v734
        %v951 = vunpack.c.l.b16 %v747
        %v952 = vunpack.c.l.b16 %v760
        %v953 = vunpack.c.l.b16 %v773
        %v954 = vunpack.c.l.b16 %v786
        %v955 = vunpack.c.l.b16 %v799
        %v956 = vunpack.c.l.b16 %v812
        %v957 = vunpack.c.l.b16 %v825
        %v958 = vunpack.c.l.b16 %v838
        %v959 = vunpack.c.l.b16 %v851
        %v960 = vunpack.c.l.b16 %v864
        %v961 = vunpack.c.l.b16 %v877
        %vm962 = vcmask 1041409
        %v963 = vsel %vm962, %v948, %v946
        %vm964 = vcmask 1042434
        %v965 = vsel %vm964, %v950, %v963
        %vm966 = vcmask 1043459
        %v967 = vsel %vm966, %v952, %v965
        %vm968 = vcmask 1044484
        %v969 = vsel %vm968, %v954, %v967
        %vm970 = vcmask 1045509
        %v971 = vsel %vm970, %v956, %v969
        %vm972 = vcmask 1046534
        %v973 = vsel %vm972, %v958, %v971
        %vm974 = vcmask 1047559
        %v975 = vsel %vm974, %v960, %v973
        %v976 = vsel %vm962, %v949, %v947
        %v977 = vsel %vm964, %v951, %v976
        %v978 = vsel %vm966, %v953, %v977
        %v979 = vsel %vm968, %v955, %v978
        %v980 = vsel %vm970, %v957, %v979
        %v981 = vsel %vm972, %v959, %v980
        %v982 = vsel %vm974, %v961, %v981
        %v983 = vpack.c.b16 %v975, %v975
        %v984 = vpack.c.b16 %v982, %v982
        %v989 = vunpack.c.l.b16 %v890
        %v990 = vunpack.c.l.b16 %v903
        %v991 = vsel %vm962, %v950, %v948
        %v992 = vsel %vm964, %v952, %v991
        %v993 = vsel %vm966, %v954, %v992
        %v994 = vsel %vm968, %v956, %v993
        %v995 = vsel %vm970, %v958, %v994
        %v996 = vsel %vm972, %v960, %v995
        %v997 = vsel %vm974, %v989, %v996
        %v998 = vsel %vm962, %v951, %v949
        %v999 = vsel %vm964, %v953, %v998
        %v1000 = vsel %vm966, %v955, %v999
        %v1001 = vsel %vm968, %v957, %v1000
        %v1002 = vsel %vm970, %v959, %v1001
        %v1003 = vsel %vm972, %v961, %v1002
        %v1004 = vsel %vm974, %v990, %v1003
        %v1005 = vpack.c.b16 %v997, %v997
        %v1006 = vpack.c.b16 %v1004, %v1004
        %v1011 = vunpack.c.l.b16 %v916
        %v1012 = vunpack.c.l.b16 %v929
        %v1013 = vsel %vm962, %v952, %v950
        %v1014 = vsel %vm964, %v954, %v1013
        %v1015 = vsel %vm966, %v956, %v1014
        %v1016 = vsel %vm968, %v958, %v1015
        %v1017 = vsel %vm970, %v960, %v1016
        %v1018 = vsel %vm972, %v989, %v1017
        %v1019 = vsel %vm974, %v1011, %v1018
        %v1020 = vsel %vm962, %v953, %v951
        %v1021 = vsel %vm964, %v955, %v1020
        %v1022 = vsel %vm966, %v957, %v1021
        %v1023 = vsel %vm968, %v959, %v1022
        %v1024 = vsel %vm970, %v961, %v1023
        %v1025 = vsel %vm972, %v990, %v1024
        %v1026 = vsel %vm974, %v1012, %v1025
        %v1027 = vpack.c.b16 %v1019, %v1019
        %v1028 = vpack.c.b16 %v1026, %v1026
        %v1031 = vld [vmem:[#allocation7] sm:$0xff]
        %v1032 = vld [vmem:[#allocation7 + $0x8] sm:$0xff]
        %v1033 = vld [vmem:[#allocation7 + $0x10] sm:$0xff]
        %v1034 = vld [vmem:[#allocation7 + $0x18] sm:$0xff]
        %v1035 = vld [vmem:[#allocation7 + $0x20] sm:$0xff]
        %v1036 = vld [vmem:[#allocation7 + $0x28] sm:$0xff]
        %v1037 = vld [vmem:[#allocation7 + $0x30] sm:$0xff]
        %v1038 = vld [vmem:[#allocation7 + $0x38] sm:$0xff]
        %v1039 = vld [vmem:[#allocation7 + $0x40] sm:$0xff]
        %v1040 = vld [vmem:[#allocation7 + $0x48] sm:$0xff]
        %v1041 = vld [vmem:[#allocation7 + $0x50] sm:$0xff]
        %v1042 = vld [vmem:[#allocation7 + $0x58] sm:$0xff]
        %v1043 = vld [vmem:[#allocation7 + $0x60] sm:$0xff]
        %v1044 = vld [vmem:[#allocation7 + $0x68] sm:$0xff]
        %v1045 = vld [vmem:[#allocation7 + $0x70] sm:$0xff]
        %v1046 = vld [vmem:[#allocation7 + $0x78] sm:$0xff]
        %v1047 = vld [vmem:[#allocation7 + $0x80] sm:$0xff]
        %v1048 = vld [vmem:[#allocation7 + $0x88] sm:$0xff]
        %v1049 = vld [vmem:[#allocation7 + $0x90] sm:$0xff]
        %v1050 = vld [vmem:[#allocation7 + $0x98] sm:$0xff]
        %v1051 = vld [vmem:[#allocation7 + $0xa0] sm:$0xff]
        %v1052 = vld [vmem:[#allocation7 + $0xa8] sm:$0xff]
        %v1053 = vld [vmem:[#allocation7 + $0xb0] sm:$0xff]
        %v1054 = vld [vmem:[#allocation7 + $0xb8] sm:$0xff]
        %v1055 = vld [vmem:[#allocation7 + $0xc0] sm:$0xff]
        %v1056 = vld [vmem:[#allocation7 + $0xc8] sm:$0xff]
        %v1057 = vld [vmem:[#allocation7 + $0xd0] sm:$0xff]
        %v1058 = vld [vmem:[#allocation7 + $0xd8] sm:$0xff]
        %v1059 = vld [vmem:[#allocation7 + $0xe0] sm:$0xff]
        %v1060 = vld [vmem:[#allocation7 + $0xe8] sm:$0xff]
        %v1061 = vld [vmem:[#allocation7 + $0xf0] sm:$0xff]
        %v1062 = vld [vmem:[#allocation7 + $0xf8] sm:$0xff]
        %v1063 = vld [vmem:[#allocation7 + $0x100] sm:$0xff]
        %v1064 = vld [vmem:[#allocation7 + $0x108] sm:$0xff]
        %v1065 = vld [vmem:[#allocation7 + $0x110] sm:$0xff]
        %v1066 = vld [vmem:[#allocation7 + $0x118] sm:$0xff]
        %v1067 = vld [vmem:[#allocation7 + $0x120] sm:$0xff]
        %v1068 = vld [vmem:[#allocation7 + $0x128] sm:$0xff]
        %v1069 = vld [vmem:[#allocation7 + $0x130] sm:$0xff]
        %v1070 = vld [vmem:[#allocation7 + $0x138] sm:$0xff]
        %v1071 = vld [vmem:[#allocation7 + $0x140] sm:$0xff]
        %v1072 = vld [vmem:[#allocation7 + $0x148] sm:$0xff]
        %v1073 = vld [vmem:[#allocation7 + $0x150] sm:$0xff]
        %v1074 = vld [vmem:[#allocation7 + $0x158] sm:$0xff]
        %v1075 = vld [vmem:[#allocation7 + $0x160] sm:$0xff]
        %v1076 = vld [vmem:[#allocation7 + $0x168] sm:$0xff]
        %v1077 = vld [vmem:[#allocation7 + $0x170] sm:$0xff]
        %v1078 = vld [vmem:[#allocation7 + $0x178] sm:$0xff]
        %v1079 = vld [vmem:[#allocation7 + $0x180] sm:$0xff]
        %v1080 = vld [vmem:[#allocation7 + $0x188] sm:$0xff]
        %v1081 = vld [vmem:[#allocation7 + $0x190] sm:$0xff]
        %v1082 = vld [vmem:[#allocation7 + $0x198] sm:$0xff]
        %v1083 = vld [vmem:[#allocation7 + $0x1a0] sm:$0xff]
        %v1084 = vld [vmem:[#allocation7 + $0x1a8] sm:$0xff]
        %v1085 = vld [vmem:[#allocation7 + $0x1b0] sm:$0xff]
        %v1086 = vld [vmem:[#allocation7 + $0x1b8] sm:$0xff]
        %v1087 = vld [vmem:[#allocation7 + $0x1c0] sm:$0xff]
        %v1088 = vld [vmem:[#allocation7 + $0x1c8] sm:$0xff]
        %v1089 = vld [vmem:[#allocation7 + $0x1d0] sm:$0xff]
        %v1090 = vld [vmem:[#allocation7 + $0x1d8] sm:$0xff]
        %v1091 = vld [vmem:[#allocation7 + $0x1e0] sm:$0xff]
        %v1092 = vld [vmem:[#allocation7 + $0x1e8] sm:$0xff]
        %v1093 = vld [vmem:[#allocation7 + $0x1f0] sm:$0xff]
        %v1094 = vld [vmem:[#allocation7 + $0x1f8] sm:$0xff]
        %v1095 = vld [vmem:[#allocation7 + $0x200] sm:$0xff]
        %v1096 = vld [vmem:[#allocation7 + $0x208] sm:$0xff]
        %v1097 = vld [vmem:[#allocation7 + $0x210] sm:$0xff]
        %v1098 = vld [vmem:[#allocation7 + $0x218] sm:$0xff]
        %v1099 = vld [vmem:[#allocation7 + $0x220] sm:$0xff]
        %v1100 = vld [vmem:[#allocation7 + $0x228] sm:$0xff]
        %v1101 = vld [vmem:[#allocation7 + $0x230] sm:$0xff]
        %v1102 = vld [vmem:[#allocation7 + $0x238] sm:$0xff]
        %v1103 = vld [vmem:[#allocation7 + $0x240] sm:$0xff]
        %v1104 = vld [vmem:[#allocation7 + $0x248] sm:$0xff]
        %v1105 = vld [vmem:[#allocation7 + $0x250] sm:$0xff]
        %v1106 = vld [vmem:[#allocation7 + $0x258] sm:$0xff]
        %v1107 = vld [vmem:[#allocation7 + $0x260] sm:$0xff]
        %v1108 = vld [vmem:[#allocation7 + $0x268] sm:$0xff]
        %v1109 = vld [vmem:[#allocation7 + $0x270] sm:$0xff]
        %v1110 = vld [vmem:[#allocation7 + $0x278] sm:$0xff]
        %v1111 = vld [vmem:[#allocation7 + $0x280] sm:$0xff]
        %v1112 = vld [vmem:[#allocation7 + $0x288] sm:$0xff]
        %v1113 = vld [vmem:[#allocation7 + $0x290] sm:$0xff]
        %v1114 = vld [vmem:[#allocation7 + $0x298] sm:$0xff]
        %v1115 = vld [vmem:[#allocation7 + $0x2a0] sm:$0xff]
        %v1116 = vld [vmem:[#allocation7 + $0x2a8] sm:$0xff]
        %v1117 = vld [vmem:[#allocation7 + $0x2b0] sm:$0xff]
        %v1118 = vld [vmem:[#allocation7 + $0x2b8] sm:$0xff]
        %v1119 = vld [vmem:[#allocation7 + $0x2c0] sm:$0xff]
        %v1120 = vld [vmem:[#allocation7 + $0x2c8] sm:$0xff]
        %v1121 = vld [vmem:[#allocation7 + $0x2d0] sm:$0xff]
        %v1122 = vld [vmem:[#allocation7 + $0x2d8] sm:$0xff]
        %v1123 = vld [vmem:[#allocation7 + $0x2e0] sm:$0xff]
        %v1124 = vld [vmem:[#allocation7 + $0x2e8] sm:$0xff]
        %v1125 = vld [vmem:[#allocation7 + $0x2f0] sm:$0xff]
        %v1126 = vld [vmem:[#allocation7 + $0x2f8] sm:$0xff]
        %v1127 = vld [vmem:[#allocation7 + $0x300] sm:$0xff]
        %v1128 = vld [vmem:[#allocation7 + $0x308] sm:$0xff]
        %v1129 = vld [vmem:[#allocation7 + $0x310] sm:$0xff]
        %v1130 = vld [vmem:[#allocation7 + $0x318] sm:$0xff]
        %v1131 = vld [vmem:[#allocation7 + $0x320] sm:$0xff]
        %v1132 = vld [vmem:[#allocation7 + $0x328] sm:$0xff]
        %v1133 = vld [vmem:[#allocation7 + $0x330] sm:$0xff]
        %v1134 = vld [vmem:[#allocation7 + $0x338] sm:$0xff]
        %v1135 = vld [vmem:[#allocation7 + $0x340] sm:$0xff]
        %v1136 = vld [vmem:[#allocation7 + $0x348] sm:$0xff]
        %v1137 = vld [vmem:[#allocation7 + $0x350] sm:$0xff]
        %v1138 = vld [vmem:[#allocation7 + $0x358] sm:$0xff]
        %v1139 = vld [vmem:[#allocation7 + $0x360] sm:$0xff]
        %v1140 = vld [vmem:[#allocation7 + $0x368] sm:$0xff]
        %v1141 = vld [vmem:[#allocation7 + $0x370] sm:$0xff]
        %v1142 = vld [vmem:[#allocation7 + $0x378] sm:$0xff]
        %v1143 = vld [vmem:[#allocation7 + $0x380] sm:$0xff]
        %v1144 = vld [vmem:[#allocation7 + $0x388] sm:$0xff]
        %v1145 = vld [vmem:[#allocation7 + $0x390] sm:$0xff]
        %v1146 = vld [vmem:[#allocation7 + $0x398] sm:$0xff]
        %v1147 = vld [vmem:[#allocation7 + $0x3a0] sm:$0xff]
        %v1148 = vld [vmem:[#allocation7 + $0x3a8] sm:$0xff]
        %v1149 = vld [vmem:[#allocation7 + $0x3b0] sm:$0xff]
        %v1150 = vld [vmem:[#allocation7 + $0x3b8] sm:$0xff]
        %v1151 = vld [vmem:[#allocation7 + $0x3c0] sm:$0xff]
        %v1152 = vld [vmem:[#allocation7 + $0x3c8] sm:$0xff]
        %v1153 = vld [vmem:[#allocation7 + $0x3d0] sm:$0xff]
        %v1154 = vld [vmem:[#allocation7 + $0x3d8] sm:$0xff]
        %v1155 = vld [vmem:[#allocation7 + $0x3e0] sm:$0xff]
        %v1156 = vld [vmem:[#allocation7 + $0x3e8] sm:$0xff]
        %v1157 = vld [vmem:[#allocation7 + $0x3f0] sm:$0xff]
        %v1158 = vld [vmem:[#allocation7 + $0x3f8] sm:$0xff]
        %v1159 = vld [vmem:[#allocation7 + $0x400] sm:$0xff]
        %v1160 = vld [vmem:[#allocation7 + $0x408] sm:$0xff]
        %v1161 = vld [vmem:[#allocation7 + $0x410] sm:$0xff]
        %v1162 = vld [vmem:[#allocation7 + $0x418] sm:$0xff]
        %v1163 = vld [vmem:[#allocation7 + $0x420] sm:$0xff]
        %v1164 = vld [vmem:[#allocation7 + $0x428] sm:$0xff]
        %v1165 = vld [vmem:[#allocation7 + $0x430] sm:$0xff]
        %v1166 = vld [vmem:[#allocation7 + $0x438] sm:$0xff]
        %v1167 = vld [vmem:[#allocation7 + $0x440] sm:$0xff]
        %v1168 = vld [vmem:[#allocation7 + $0x448] sm:$0xff]
        %v1169 = vld [vmem:[#allocation7 + $0x450] sm:$0xff]
        %v1170 = vld [vmem:[#allocation7 + $0x458] sm:$0xff]
        %v1171 = vld [vmem:[#allocation7 + $0x460] sm:$0xff]
        %v1172 = vld [vmem:[#allocation7 + $0x468] sm:$0xff]
        %v1173 = vld [vmem:[#allocation7 + $0x470] sm:$0xff]
        %v1174 = vld [vmem:[#allocation7 + $0x478] sm:$0xff]
        %v1175 = vld [vmem:[#allocation7 + $0x480] sm:$0xff]
        %v1176 = vld [vmem:[#allocation7 + $0x488] sm:$0xff]
        %v1177 = vld [vmem:[#allocation7 + $0x490] sm:$0xff]
        %v1178 = vld [vmem:[#allocation7 + $0x498] sm:$0xff]
        %v1179 = vld [vmem:[#allocation7 + $0x4a0] sm:$0xff]
        %v1180 = vld [vmem:[#allocation7 + $0x4a8] sm:$0xff]
        %v1181 = vld [vmem:[#allocation7 + $0x4b0] sm:$0xff]
        %v1182 = vld [vmem:[#allocation7 + $0x4b8] sm:$0xff]
        %v1183 = vld [vmem:[#allocation7 + $0x4c0] sm:$0xff]
        %v1184 = vld [vmem:[#allocation7 + $0x4c8] sm:$0xff]
        %v1185 = vld [vmem:[#allocation7 + $0x4d0] sm:$0xff]
        %v1186 = vld [vmem:[#allocation7 + $0x4d8] sm:$0xff]
        %v1187 = vld [vmem:[#allocation7 + $0x4e0] sm:$0xff]
        %v1188 = vld [vmem:[#allocation7 + $0x4e8] sm:$0xff]
        %v1189 = vld [vmem:[#allocation7 + $0x4f0] sm:$0xff]
        %v1190 = vld [vmem:[#allocation7 + $0x4f8] sm:$0xff]
        %v1191 = vld [vmem:[#allocation7 + $0x500] sm:$0xff]
        %v1192 = vld [vmem:[#allocation7 + $0x508] sm:$0xff]
        %v1193 = vld [vmem:[#allocation7 + $0x510] sm:$0xff]
        %v1194 = vld [vmem:[#allocation7 + $0x518] sm:$0xff]
        %v1195 = vld [vmem:[#allocation7 + $0x520] sm:$0xff]
        %v1196 = vld [vmem:[#allocation7 + $0x528] sm:$0xff]
        %v1197 = vld [vmem:[#allocation7 + $0x530] sm:$0xff]
        %v1198 = vld [vmem:[#allocation7 + $0x538] sm:$0xff]
        %v1199 = vld [vmem:[#allocation7 + $0x540] sm:$0xff]
        %v1200 = vld [vmem:[#allocation7 + $0x548] sm:$0xff]
        %v1201 = vld [vmem:[#allocation7 + $0x550] sm:$0xff]
        %v1202 = vld [vmem:[#allocation7 + $0x558] sm:$0xff]
        %v1203 = vld [vmem:[#allocation7 + $0x560] sm:$0xff]
        %v1204 = vld [vmem:[#allocation7 + $0x568] sm:$0xff]
        %v1205 = vld [vmem:[#allocation7 + $0x570] sm:$0xff]
        %v1206 = vld [vmem:[#allocation7 + $0x578] sm:$0xff]
        %v1207 = vld [vmem:[#allocation7 + $0x580] sm:$0xff]
        %v1208 = vld [vmem:[#allocation7 + $0x588] sm:$0xff]
        %v1209 = vld [vmem:[#allocation7 + $0x590] sm:$0xff]
        %v1210 = vld [vmem:[#allocation7 + $0x598] sm:$0xff]
        %v1211 = vld [vmem:[#allocation7 + $0x5a0] sm:$0xff]
        %v1212 = vld [vmem:[#allocation7 + $0x5a8] sm:$0xff]
        %v1213 = vld [vmem:[#allocation7 + $0x5b0] sm:$0xff]
        %v1214 = vld [vmem:[#allocation7 + $0x5b8] sm:$0xff]
        %v1215 = vld [vmem:[#allocation7 + $0x5c0] sm:$0xff]
        %v1216 = vld [vmem:[#allocation7 + $0x5c8] sm:$0xff]
        %v1217 = vld [vmem:[#allocation7 + $0x5d0] sm:$0xff]
        %v1218 = vld [vmem:[#allocation7 + $0x5d8] sm:$0xff]
        %v1219 = vld [vmem:[#allocation7 + $0x5e0] sm:$0xff]
        %v1220 = vld [vmem:[#allocation7 + $0x5e8] sm:$0xff]
        %v1221 = vld [vmem:[#allocation7 + $0x5f0] sm:$0xff]
        %v1222 = vld [vmem:[#allocation7 + $0x5f8] sm:$0xff]
        %v1223 = vld [vmem:[%s3] sm:$0xf]
        %v1225 = vlaneseq
        %v1226 = vshrl.u32 %v1225, 7
        %v1227 = vsub.s32 0, %v1226
        %v1228 = vrot.slane %v1223, %v1227
        %v1229 = vlaneseq
        %v1230 = vshrl.u32 %v1229, 7
        %v1231 = vsub.s32 1, %v1230
        %v1232 = vrot.slane %v1223, %v1231
        %v1233 = vlaneseq
        %v1234 = vshrl.u32 %v1233, 7
        %v1235 = vsub.s32 2, %v1234
        %v1236 = vrot.slane %v1223, %v1235
        %v1237 = vlaneseq
        %v1238 = vshrl.u32 %v1237, 7
        %v1239 = vsub.s32 3, %v1238
        %v1240 = vrot.slane %v1223, %v1239
        %v1437 = vunpack.c.l.b16 %v1031
        %v1438 = vunpack.c.h.b16 %v1031
        %v1439 = vunpack.c.l.b16 %v1032
        %v1440 = vunpack.c.h.b16 %v1032
        %v1441 = vunpack.c.l.b16 %v1033
        %v1442 = vunpack.c.h.b16 %v1033
        %v1443 = vunpack.c.l.b16 %v1034
        %v1444 = vunpack.c.h.b16 %v1034
        %v1445 = vunpack.c.l.b16 %v1035
        %v1446 = vunpack.c.h.b16 %v1035
        %v1447 = vunpack.c.l.b16 %v1036
        %v1448 = vunpack.c.h.b16 %v1036
        %v1449 = vunpack.c.l.b16 %v1037
        %v1450 = vunpack.c.h.b16 %v1037
        %v1451 = vunpack.c.l.b16 %v1038
        %v1452 = vunpack.c.h.b16 %v1038
        %v1453 = vunpack.c.l.b16 %v1039
        %v1454 = vunpack.c.h.b16 %v1039
        %v1455 = vunpack.c.l.b16 %v1040
        %v1456 = vunpack.c.h.b16 %v1040
        %v1457 = vunpack.c.l.b16 %v1041
        %v1458 = vunpack.c.h.b16 %v1041
        %v1459 = vunpack.c.l.b16 %v1042
        %v1460 = vunpack.c.h.b16 %v1042
        %v1461 = vunpack.c.l.b16 %v1043
        %v1462 = vunpack.c.h.b16 %v1043
        %v1463 = vunpack.c.l.b16 %v1044
        %v1464 = vunpack.c.h.b16 %v1044
        %v1465 = vunpack.c.l.b16 %v1045
        %v1466 = vunpack.c.h.b16 %v1045
        %v1467 = vunpack.c.l.b16 %v1046
        %v1468 = vunpack.c.h.b16 %v1046
        %v1469 = vunpack.c.l.b16 %v1047
        %v1470 = vunpack.c.h.b16 %v1047
        %v1471 = vunpack.c.l.b16 %v1048
        %v1472 = vunpack.c.h.b16 %v1048
        %v1473 = vunpack.c.l.b16 %v1049
        %v1474 = vunpack.c.h.b16 %v1049
        %v1475 = vunpack.c.l.b16 %v1050
        %v1476 = vunpack.c.h.b16 %v1050
        %v1477 = vunpack.c.l.b16 %v1051
        %v1478 = vunpack.c.h.b16 %v1051
        %v1479 = vunpack.c.l.b16 %v1052
        %v1480 = vunpack.c.h.b16 %v1052
        %v1481 = vunpack.c.l.b16 %v1053
        %v1482 = vunpack.c.h.b16 %v1053
        %v1483 = vunpack.c.l.b16 %v1054
        %v1484 = vunpack.c.h.b16 %v1054
        %v1485 = vunpack.c.l.b16 %v1055
        %v1486 = vunpack.c.h.b16 %v1055
        %v1487 = vunpack.c.l.b16 %v1056
        %v1488 = vunpack.c.h.b16 %v1056
        %v1489 = vunpack.c.l.b16 %v1057
        %v1490 = vunpack.c.h.b16 %v1057
        %v1491 = vunpack.c.l.b16 %v1058
        %v1492 = vunpack.c.h.b16 %v1058
        %v1493 = vunpack.c.l.b16 %v1059
        %v1494 = vunpack.c.h.b16 %v1059
        %v1495 = vunpack.c.l.b16 %v1060
        %v1496 = vunpack.c.h.b16 %v1060
        %v1497 = vunpack.c.l.b16 %v1061
        %v1498 = vunpack.c.h.b16 %v1061
        %v1499 = vunpack.c.l.b16 %v1062
        %v1500 = vunpack.c.h.b16 %v1062
        %v1501 = vunpack.c.l.b16 %v1063
        %v1502 = vunpack.c.h.b16 %v1063
        %v1503 = vunpack.c.l.b16 %v1064
        %v1504 = vunpack.c.h.b16 %v1064
        %v1505 = vunpack.c.l.b16 %v1065
        %v1506 = vunpack.c.h.b16 %v1065
        %v1507 = vunpack.c.l.b16 %v1066
        %v1508 = vunpack.c.h.b16 %v1066
        %v1509 = vunpack.c.l.b16 %v1067
        %v1510 = vunpack.c.h.b16 %v1067
        %v1511 = vunpack.c.l.b16 %v1068
        %v1512 = vunpack.c.h.b16 %v1068
        %v1513 = vunpack.c.l.b16 %v1069
        %v1514 = vunpack.c.h.b16 %v1069
        %v1515 = vunpack.c.l.b16 %v1070
        %v1516 = vunpack.c.h.b16 %v1070
        %v1517 = vunpack.c.l.b16 %v1071
        %v1518 = vunpack.c.h.b16 %v1071
        %v1519 = vunpack.c.l.b16 %v1072
        %v1520 = vunpack.c.h.b16 %v1072
        %v1521 = vunpack.c.l.b16 %v1073
        %v1522 = vunpack.c.h.b16 %v1073
        %v1523 = vunpack.c.l.b16 %v1074
        %v1524 = vunpack.c.h.b16 %v1074
        %v1525 = vunpack.c.l.b16 %v1075
        %v1526 = vunpack.c.h.b16 %v1075
        %v1527 = vunpack.c.l.b16 %v1076
        %v1528 = vunpack.c.h.b16 %v1076
        %v1529 = vunpack.c.l.b16 %v1077
        %v1530 = vunpack.c.h.b16 %v1077
        %v1531 = vunpack.c.l.b16 %v1078
        %v1532 = vunpack.c.h.b16 %v1078
        %v1533 = vunpack.c.l.b16 %v1079
        %v1534 = vunpack.c.h.b16 %v1079
        %v1535 = vunpack.c.l.b16 %v1080
        %v1536 = vunpack.c.h.b16 %v1080
        %v1537 = vunpack.c.l.b16 %v1081
        %v1538 = vunpack.c.h.b16 %v1081
        %v1539 = vunpack.c.l.b16 %v1082
        %v1540 = vunpack.c.h.b16 %v1082
        %v1541 = vunpack.c.l.b16 %v1083
        %v1542 = vunpack.c.h.b16 %v1083
        %v1543 = vunpack.c.l.b16 %v1084
        %v1544 = vunpack.c.h.b16 %v1084
        %v1545 = vunpack.c.l.b16 %v1085
        %v1546 = vunpack.c.h.b16 %v1085
        %v1547 = vunpack.c.l.b16 %v1086
        %v1548 = vunpack.c.h.b16 %v1086
        %v1549 = vunpack.c.l.b16 %v1087
        %v1550 = vunpack.c.h.b16 %v1087
        %v1551 = vunpack.c.l.b16 %v1088
        %v1552 = vunpack.c.h.b16 %v1088
        %v1553 = vunpack.c.l.b16 %v1089
        %v1554 = vunpack.c.h.b16 %v1089
        %v1555 = vunpack.c.l.b16 %v1090
        %v1556 = vunpack.c.h.b16 %v1090
        %v1557 = vunpack.c.l.b16 %v1091
        %v1558 = vunpack.c.h.b16 %v1091
        %v1559 = vunpack.c.l.b16 %v1092
        %v1560 = vunpack.c.h.b16 %v1092
        %v1561 = vunpack.c.l.b16 %v1093
        %v1562 = vunpack.c.h.b16 %v1093
        %v1563 = vunpack.c.l.b16 %v1094
        %v1564 = vunpack.c.h.b16 %v1094
        %v1565 = vunpack.c.l.b16 %v1095
        %v1566 = vunpack.c.h.b16 %v1095
        %v1567 = vunpack.c.l.b16 %v1096
        %v1568 = vunpack.c.h.b16 %v1096
        %v1569 = vunpack.c.l.b16 %v1097
        %v1570 = vunpack.c.h.b16 %v1097
        %v1571 = vunpack.c.l.b16 %v1098
        %v1572 = vunpack.c.h.b16 %v1098
        %v1573 = vunpack.c.l.b16 %v1099
        %v1574 = vunpack.c.h.b16 %v1099
        %v1575 = vunpack.c.l.b16 %v1100
        %v1576 = vunpack.c.h.b16 %v1100
        %v1577 = vunpack.c.l.b16 %v1101
        %v1578 = vunpack.c.h.b16 %v1101
        %v1579 = vunpack.c.l.b16 %v1102
        %v1580 = vunpack.c.h.b16 %v1102
        %v1581 = vunpack.c.l.b16 %v1103
        %v1582 = vunpack.c.h.b16 %v1103
        %v1583 = vunpack.c.l.b16 %v1104
        %v1584 = vunpack.c.h.b16 %v1104
        %v1585 = vunpack.c.l.b16 %v1105
        %v1586 = vunpack.c.h.b16 %v1105
        %v1587 = vunpack.c.l.b16 %v1106
        %v1588 = vunpack.c.h.b16 %v1106
        %v1589 = vunpack.c.l.b16 %v1107
        %v1590 = vunpack.c.h.b16 %v1107
        %v1591 = vunpack.c.l.b16 %v1108
        %v1592 = vunpack.c.h.b16 %v1108
        %v1593 = vunpack.c.l.b16 %v1109
        %v1594 = vunpack.c.h.b16 %v1109
        %v1595 = vunpack.c.l.b16 %v1110
        %v1596 = vunpack.c.h.b16 %v1110
        %v1597 = vunpack.c.l.b16 %v1111
        %v1598 = vunpack.c.h.b16 %v1111
        %v1599 = vunpack.c.l.b16 %v1112
        %v1600 = vunpack.c.h.b16 %v1112
        %v1601 = vunpack.c.l.b16 %v1113
        %v1602 = vunpack.c.h.b16 %v1113
        %v1603 = vunpack.c.l.b16 %v1114
        %v1604 = vunpack.c.h.b16 %v1114
        %v1605 = vunpack.c.l.b16 %v1115
        %v1606 = vunpack.c.h.b16 %v1115
        %v1607 = vunpack.c.l.b16 %v1116
        %v1608 = vunpack.c.h.b16 %v1116
        %v1609 = vunpack.c.l.b16 %v1117
        %v1610 = vunpack.c.h.b16 %v1117
        %v1611 = vunpack.c.l.b16 %v1118
        %v1612 = vunpack.c.h.b16 %v1118
        %v1613 = vunpack.c.l.b16 %v1119
        %v1614 = vunpack.c.h.b16 %v1119
        %v1615 = vunpack.c.l.b16 %v1120
        %v1616 = vunpack.c.h.b16 %v1120
        %v1617 = vunpack.c.l.b16 %v1121
        %v1618 = vunpack.c.h.b16 %v1121
        %v1619 = vunpack.c.l.b16 %v1122
        %v1620 = vunpack.c.h.b16 %v1122
        %v1621 = vunpack.c.l.b16 %v1123
        %v1622 = vunpack.c.h.b16 %v1123
        %v1623 = vunpack.c.l.b16 %v1124
        %v1624 = vunpack.c.h.b16 %v1124
        %v1625 = vunpack.c.l.b16 %v1125
        %v1626 = vunpack.c.h.b16 %v1125
        %v1627 = vunpack.c.l.b16 %v1126
        %v1628 = vunpack.c.h.b16 %v1126
        %v1629 = vunpack.c.l.b16 %v1127
        %v1630 = vunpack.c.h.b16 %v1127
        %v1631 = vunpack.c.l.b16 %v1128
        %v1632 = vunpack.c.h.b16 %v1128
        %v1633 = vunpack.c.l.b16 %v1129
        %v1634 = vunpack.c.h.b16 %v1129
        %v1635 = vunpack.c.l.b16 %v1130
        %v1636 = vunpack.c.h.b16 %v1130
        %v1637 = vunpack.c.l.b16 %v1131
        %v1638 = vunpack.c.h.b16 %v1131
        %v1639 = vunpack.c.l.b16 %v1132
        %v1640 = vunpack.c.h.b16 %v1132
        %v1641 = vunpack.c.l.b16 %v1133
        %v1642 = vunpack.c.h.b16 %v1133
        %v1643 = vunpack.c.l.b16 %v1134
        %v1644 = vunpack.c.h.b16 %v1134
        %v1645 = vunpack.c.l.b16 %v1135
        %v1646 = vunpack.c.h.b16 %v1135
        %v1647 = vunpack.c.l.b16 %v1136
        %v1648 = vunpack.c.h.b16 %v1136
        %v1649 = vunpack.c.l.b16 %v1137
        %v1650 = vunpack.c.h.b16 %v1137
        %v1651 = vunpack.c.l.b16 %v1138
        %v1652 = vunpack.c.h.b16 %v1138
        %v1653 = vunpack.c.l.b16 %v1139
        %v1654 = vunpack.c.h.b16 %v1139
        %v1655 = vunpack.c.l.b16 %v1140
        %v1656 = vunpack.c.h.b16 %v1140
        %v1657 = vunpack.c.l.b16 %v1141
        %v1658 = vunpack.c.h.b16 %v1141
        %v1659 = vunpack.c.l.b16 %v1142
        %v1660 = vunpack.c.h.b16 %v1142
        %v1661 = vunpack.c.l.b16 %v1143
        %v1662 = vunpack.c.h.b16 %v1143
        %v1663 = vunpack.c.l.b16 %v1144
        %v1664 = vunpack.c.h.b16 %v1144
        %v1665 = vunpack.c.l.b16 %v1145
        %v1666 = vunpack.c.h.b16 %v1145
        %v1667 = vunpack.c.l.b16 %v1146
        %v1668 = vunpack.c.h.b16 %v1146
        %v1669 = vunpack.c.l.b16 %v1147
        %v1670 = vunpack.c.h.b16 %v1147
        %v1671 = vunpack.c.l.b16 %v1148
        %v1672 = vunpack.c.h.b16 %v1148
        %v1673 = vunpack.c.l.b16 %v1149
        %v1674 = vunpack.c.h.b16 %v1149
        %v1675 = vunpack.c.l.b16 %v1150
        %v1676 = vunpack.c.h.b16 %v1150
        %v1677 = vunpack.c.l.b16 %v1151
        %v1678 = vunpack.c.h.b16 %v1151
        %v1679 = vunpack.c.l.b16 %v1152
        %v1680 = vunpack.c.h.b16 %v1152
        %v1681 = vunpack.c.l.b16 %v1153
        %v1682 = vunpack.c.h.b16 %v1153
        %v1683 = vunpack.c.l.b16 %v1154
        %v1684 = vunpack.c.h.b16 %v1154
        %v1685 = vunpack.c.l.b16 %v1155
        %v1686 = vunpack.c.h.b16 %v1155
        %v1687 = vunpack.c.l.b16 %v1156
        %v1688 = vunpack.c.h.b16 %v1156
        %v1689 = vunpack.c.l.b16 %v1157
        %v1690 = vunpack.c.h.b16 %v1157
        %v1691 = vunpack.c.l.b16 %v1158
        %v1692 = vunpack.c.h.b16 %v1158
        %v1693 = vunpack.c.l.b16 %v1159
        %v1694 = vunpack.c.h.b16 %v1159
        %v1695 = vunpack.c.l.b16 %v1160
        %v1696 = vunpack.c.h.b16 %v1160
        %v1697 = vunpack.c.l.b16 %v1161
        %v1698 = vunpack.c.h.b16 %v1161
        %v1699 = vunpack.c.l.b16 %v1162
        %v1700 = vunpack.c.h.b16 %v1162
        %v1701 = vunpack.c.l.b16 %v1163
        %v1702 = vunpack.c.h.b16 %v1163
        %v1703 = vunpack.c.l.b16 %v1164
        %v1704 = vunpack.c.h.b16 %v1164
        %v1705 = vunpack.c.l.b16 %v1165
        %v1706 = vunpack.c.h.b16 %v1165
        %v1707 = vunpack.c.l.b16 %v1166
        %v1708 = vunpack.c.h.b16 %v1166
        %v1709 = vunpack.c.l.b16 %v1167
        %v1710 = vunpack.c.h.b16 %v1167
        %v1711 = vunpack.c.l.b16 %v1168
        %v1712 = vunpack.c.h.b16 %v1168
        %v1713 = vunpack.c.l.b16 %v1169
        %v1714 = vunpack.c.h.b16 %v1169
        %v1715 = vunpack.c.l.b16 %v1170
        %v1716 = vunpack.c.h.b16 %v1170
        %v1717 = vunpack.c.l.b16 %v1171
        %v1718 = vunpack.c.h.b16 %v1171
        %v1719 = vunpack.c.l.b16 %v1172
        %v1720 = vunpack.c.h.b16 %v1172
        %v1721 = vunpack.c.l.b16 %v1173
        %v1722 = vunpack.c.h.b16 %v1173
        %v1723 = vunpack.c.l.b16 %v1174
        %v1724 = vunpack.c.h.b16 %v1174
        %v1725 = vunpack.c.l.b16 %v1175
        %v1726 = vunpack.c.h.b16 %v1175
        %v1727 = vunpack.c.l.b16 %v1176
        %v1728 = vunpack.c.h.b16 %v1176
        %v1729 = vunpack.c.l.b16 %v1177
        %v1730 = vunpack.c.h.b16 %v1177
        %v1731 = vunpack.c.l.b16 %v1178
        %v1732 = vunpack.c.h.b16 %v1178
        %v1733 = vunpack.c.l.b16 %v1179
        %v1734 = vunpack.c.h.b16 %v1179
        %v1735 = vunpack.c.l.b16 %v1180
        %v1736 = vunpack.c.h.b16 %v1180
        %v1737 = vunpack.c.l.b16 %v1181
        %v1738 = vunpack.c.h.b16 %v1181
        %v1739 = vunpack.c.l.b16 %v1182
        %v1740 = vunpack.c.h.b16 %v1182
        %v1741 = vunpack.c.l.b16 %v1183
        %v1742 = vunpack.c.h.b16 %v1183
        %v1743 = vunpack.c.l.b16 %v1184
        %v1744 = vunpack.c.h.b16 %v1184
        %v1745 = vunpack.c.l.b16 %v1185
        %v1746 = vunpack.c.h.b16 %v1185
        %v1747 = vunpack.c.l.b16 %v1186
        %v1748 = vunpack.c.h.b16 %v1186
        %v1749 = vunpack.c.l.b16 %v1187
        %v1750 = vunpack.c.h.b16 %v1187
        %v1751 = vunpack.c.l.b16 %v1188
        %v1752 = vunpack.c.h.b16 %v1188
        %v1753 = vunpack.c.l.b16 %v1189
        %v1754 = vunpack.c.h.b16 %v1189
        %v1755 = vunpack.c.l.b16 %v1190
        %v1756 = vunpack.c.h.b16 %v1190
        %v1757 = vunpack.c.l.b16 %v1191
        %v1758 = vunpack.c.h.b16 %v1191
        %v1759 = vunpack.c.l.b16 %v1192
        %v1760 = vunpack.c.h.b16 %v1192
        %v1761 = vunpack.c.l.b16 %v1193
        %v1762 = vunpack.c.h.b16 %v1193
        %v1763 = vunpack.c.l.b16 %v1194
        %v1764 = vunpack.c.h.b16 %v1194
        %v1765 = vunpack.c.l.b16 %v1195
        %v1766 = vunpack.c.h.b16 %v1195
        %v1767 = vunpack.c.l.b16 %v1196
        %v1768 = vunpack.c.h.b16 %v1196
        %v1769 = vunpack.c.l.b16 %v1197
        %v1770 = vunpack.c.h.b16 %v1197
        %v1771 = vunpack.c.l.b16 %v1198
        %v1772 = vunpack.c.h.b16 %v1198
        %v1773 = vunpack.c.l.b16 %v1199
        %v1774 = vunpack.c.h.b16 %v1199
        %v1775 = vunpack.c.l.b16 %v1200
        %v1776 = vunpack.c.h.b16 %v1200
        %v1777 = vunpack.c.l.b16 %v1201
        %v1778 = vunpack.c.h.b16 %v1201
        %v1779 = vunpack.c.l.b16 %v1202
        %v1780 = vunpack.c.h.b16 %v1202
        %v1781 = vunpack.c.l.b16 %v1203
        %v1782 = vunpack.c.h.b16 %v1203
        %v1783 = vunpack.c.l.b16 %v1204
        %v1784 = vunpack.c.h.b16 %v1204
        %v1785 = vunpack.c.l.b16 %v1205
        %v1786 = vunpack.c.h.b16 %v1205
        %v1787 = vunpack.c.l.b16 %v1206
        %v1788 = vunpack.c.h.b16 %v1206
        %v1789 = vunpack.c.l.b16 %v1207
        %v1790 = vunpack.c.h.b16 %v1207
        %v1791 = vunpack.c.l.b16 %v1208
        %v1792 = vunpack.c.h.b16 %v1208
        %v1793 = vunpack.c.l.b16 %v1209
        %v1794 = vunpack.c.h.b16 %v1209
        %v1795 = vunpack.c.l.b16 %v1210
        %v1796 = vunpack.c.h.b16 %v1210
        %v1797 = vunpack.c.l.b16 %v1211
        %v1798 = vunpack.c.h.b16 %v1211
        %v1799 = vunpack.c.l.b16 %v1212
        %v1800 = vunpack.c.h.b16 %v1212
        %v1801 = vunpack.c.l.b16 %v1213
        %v1802 = vunpack.c.h.b16 %v1213
        %v1803 = vunpack.c.l.b16 %v1214
        %v1804 = vunpack.c.h.b16 %v1214
        %v1805 = vunpack.c.l.b16 %v1215
        %v1806 = vunpack.c.h.b16 %v1215
        %v1807 = vunpack.c.l.b16 %v1216
        %v1808 = vunpack.c.h.b16 %v1216
        %v1809 = vunpack.c.l.b16 %v1217
        %v1810 = vunpack.c.h.b16 %v1217
        %v1811 = vunpack.c.l.b16 %v1218
        %v1812 = vunpack.c.h.b16 %v1218
        %v1813 = vunpack.c.l.b16 %v1219
        %v1814 = vunpack.c.h.b16 %v1219
        %v1815 = vunpack.c.l.b16 %v1220
        %v1816 = vunpack.c.h.b16 %v1220
        %v1817 = vunpack.c.l.b16 %v1221
        %v1818 = vunpack.c.h.b16 %v1221
        %v1819 = vunpack.c.l.b16 %v1222
        %v1820 = vunpack.c.h.b16 %v1222
        %v1821 = vpack.c.b16 %v1441, %v1437
        %v1822 = vpack.c.b16 %v1442, %v1438
        %v1823 = vpack.c.b16 %v1443, %v1439
        %v1824 = vpack.c.b16 %v1444, %v1440
        %v1825 = vpack.c.b16 %v1449, %v1445
        %v1826 = vpack.c.b16 %v1450, %v1446
        %v1827 = vpack.c.b16 %v1451, %v1447
        %v1828 = vpack.c.b16 %v1452, %v1448
        %v1829 = vpack.c.b16 %v1457, %v1453
        %v1830 = vpack.c.b16 %v1458, %v1454
        %v1831 = vpack.c.b16 %v1459, %v1455
        %v1832 = vpack.c.b16 %v1460, %v1456
        %v1833 = vpack.c.b16 %v1465, %v1461
        %v1834 = vpack.c.b16 %v1466, %v1462
        %v1835 = vpack.c.b16 %v1467, %v1463
        %v1836 = vpack.c.b16 %v1468, %v1464
        %v1837 = vpack.c.b16 %v1473, %v1469
        %v1838 = vpack.c.b16 %v1474, %v1470
        %v1839 = vpack.c.b16 %v1475, %v1471
        %v1840 = vpack.c.b16 %v1476, %v1472
        %v1841 = vpack.c.b16 %v1481, %v1477
        %v1842 = vpack.c.b16 %v1482, %v1478
        %v1843 = vpack.c.b16 %v1483, %v1479
        %v1844 = vpack.c.b16 %v1484, %v1480
        %v1845 = vpack.c.b16 %v1489, %v1485
        %v1846 = vpack.c.b16 %v1490, %v1486
        %v1847 = vpack.c.b16 %v1491, %v1487
        %v1848 = vpack.c.b16 %v1492, %v1488
        %v1849 = vpack.c.b16 %v1497, %v1493
        %v1850 = vpack.c.b16 %v1498, %v1494
        %v1851 = vpack.c.b16 %v1499, %v1495
        %v1852 = vpack.c.b16 %v1500, %v1496
        %v1853 = vpack.c.b16 %v1505, %v1501
        %v1854 = vpack.c.b16 %v1506, %v1502
        %v1855 = vpack.c.b16 %v1507, %v1503
        %v1856 = vpack.c.b16 %v1508, %v1504
        %v1857 = vpack.c.b16 %v1513, %v1509
        %v1858 = vpack.c.b16 %v1514, %v1510
        %v1859 = vpack.c.b16 %v1515, %v1511
        %v1860 = vpack.c.b16 %v1516, %v1512
        %v1861 = vpack.c.b16 %v1521, %v1517
        %v1862 = vpack.c.b16 %v1522, %v1518
        %v1863 = vpack.c.b16 %v1523, %v1519
        %v1864 = vpack.c.b16 %v1524, %v1520
        %v1865 = vpack.c.b16 %v1529, %v1525
        %v1866 = vpack.c.b16 %v1530, %v1526
        %v1867 = vpack.c.b16 %v1531, %v1527
        %v1868 = vpack.c.b16 %v1532, %v1528
        %v1869 = vpack.c.b16 %v1537, %v1533
        %v1870 = vpack.c.b16 %v1538, %v1534
        %v1871 = vpack.c.b16 %v1539, %v1535
        %v1872 = vpack.c.b16 %v1540, %v1536
        %v1873 = vpack.c.b16 %v1545, %v1541
        %v1874 = vpack.c.b16 %v1546, %v1542
        %v1875 = vpack.c.b16 %v1547, %v1543
        %v1876 = vpack.c.b16 %v1548, %v1544
        %v1877 = vpack.c.b16 %v1553, %v1549
        %v1878 = vpack.c.b16 %v1554, %v1550
        %v1879 = vpack.c.b16 %v1555, %v1551
        %v1880 = vpack.c.b16 %v1556, %v1552
        %v1881 = vpack.c.b16 %v1561, %v1557
        %v1882 = vpack.c.b16 %v1562, %v1558
        %v1883 = vpack.c.b16 %v1563, %v1559
        %v1884 = vpack.c.b16 %v1564, %v1560
        %v1885 = vpack.c.b16 %v1569, %v1565
        %v1886 = vpack.c.b16 %v1570, %v1566
        %v1887 = vpack.c.b16 %v1571, %v1567
        %v1888 = vpack.c.b16 %v1572, %v1568
        %v1889 = vpack.c.b16 %v1577, %v1573
        %v1890 = vpack.c.b16 %v1578, %v1574
        %v1891 = vpack.c.b16 %v1579, %v1575
        %v1892 = vpack.c.b16 %v1580, %v1576
        %v1893 = vpack.c.b16 %v1585, %v1581
        %v1894 = vpack.c.b16 %v1586, %v1582
        %v1895 = vpack.c.b16 %v1587, %v1583
        %v1896 = vpack.c.b16 %v1588, %v1584
        %v1897 = vpack.c.b16 %v1593, %v1589
        %v1898 = vpack.c.b16 %v1594, %v1590
        %v1899 = vpack.c.b16 %v1595, %v1591
        %v1900 = vpack.c.b16 %v1596, %v1592
        %v1901 = vpack.c.b16 %v1601, %v1597
        %v1902 = vpack.c.b16 %v1602, %v1598
        %v1903 = vpack.c.b16 %v1603, %v1599
        %v1904 = vpack.c.b16 %v1604, %v1600
        %v1905 = vpack.c.b16 %v1609, %v1605
        %v1906 = vpack.c.b16 %v1610, %v1606
        %v1907 = vpack.c.b16 %v1611, %v1607
        %v1908 = vpack.c.b16 %v1612, %v1608
        %v1909 = vpack.c.b16 %v1617, %v1613
        %v1910 = vpack.c.b16 %v1618, %v1614
        %v1911 = vpack.c.b16 %v1619, %v1615
        %v1912 = vpack.c.b16 %v1620, %v1616
        %v1913 = vpack.c.b16 %v1625, %v1621
        %v1914 = vpack.c.b16 %v1626, %v1622
        %v1915 = vpack.c.b16 %v1627, %v1623
        %v1916 = vpack.c.b16 %v1628, %v1624
        %v1917 = vpack.c.b16 %v1633, %v1629
        %v1918 = vpack.c.b16 %v1634, %v1630
        %v1919 = vpack.c.b16 %v1635, %v1631
        %v1920 = vpack.c.b16 %v1636, %v1632
        %v1921 = vpack.c.b16 %v1641, %v1637
        %v1922 = vpack.c.b16 %v1642, %v1638
        %v1923 = vpack.c.b16 %v1643, %v1639
        %v1924 = vpack.c.b16 %v1644, %v1640
        %v1925 = vpack.c.b16 %v1649, %v1645
        %v1926 = vpack.c.b16 %v1650, %v1646
        %v1927 = vpack.c.b16 %v1651, %v1647
        %v1928 = vpack.c.b16 %v1652, %v1648
        %v1929 = vpack.c.b16 %v1657, %v1653
        %v1930 = vpack.c.b16 %v1658, %v1654
        %v1931 = vpack.c.b16 %v1659, %v1655
        %v1932 = vpack.c.b16 %v1660, %v1656
        %v1933 = vpack.c.b16 %v1665, %v1661
        %v1934 = vpack.c.b16 %v1666, %v1662
        %v1935 = vpack.c.b16 %v1667, %v1663
        %v1936 = vpack.c.b16 %v1668, %v1664
        %v1937 = vpack.c.b16 %v1673, %v1669
        %v1938 = vpack.c.b16 %v1674, %v1670
        %v1939 = vpack.c.b16 %v1675, %v1671
        %v1940 = vpack.c.b16 %v1676, %v1672
        %v1941 = vpack.c.b16 %v1681, %v1677
        %v1942 = vpack.c.b16 %v1682, %v1678
        %v1943 = vpack.c.b16 %v1683, %v1679
        %v1944 = vpack.c.b16 %v1684, %v1680
        %v1945 = vpack.c.b16 %v1689, %v1685
        %v1946 = vpack.c.b16 %v1690, %v1686
        %v1947 = vpack.c.b16 %v1691, %v1687
        %v1948 = vpack.c.b16 %v1692, %v1688
        %v1949 = vpack.c.b16 %v1697, %v1693
        %v1950 = vpack.c.b16 %v1698, %v1694
        %v1951 = vpack.c.b16 %v1699, %v1695
        %v1952 = vpack.c.b16 %v1700, %v1696
        %v1953 = vpack.c.b16 %v1705, %v1701
        %v1954 = vpack.c.b16 %v1706, %v1702
        %v1955 = vpack.c.b16 %v1707, %v1703
        %v1956 = vpack.c.b16 %v1708, %v1704
        %v1957 = vpack.c.b16 %v1713, %v1709
        %v1958 = vpack.c.b16 %v1714, %v1710
        %v1959 = vpack.c.b16 %v1715, %v1711
        %v1960 = vpack.c.b16 %v1716, %v1712
        %v1961 = vpack.c.b16 %v1721, %v1717
        %v1962 = vpack.c.b16 %v1722, %v1718
        %v1963 = vpack.c.b16 %v1723, %v1719
        %v1964 = vpack.c.b16 %v1724, %v1720
        %v1965 = vpack.c.b16 %v1729, %v1725
        %v1966 = vpack.c.b16 %v1730, %v1726
        %v1967 = vpack.c.b16 %v1731, %v1727
        %v1968 = vpack.c.b16 %v1732, %v1728
        %v1969 = vpack.c.b16 %v1737, %v1733
        %v1970 = vpack.c.b16 %v1738, %v1734
        %v1971 = vpack.c.b16 %v1739, %v1735
        %v1972 = vpack.c.b16 %v1740, %v1736
        %v1973 = vpack.c.b16 %v1745, %v1741
        %v1974 = vpack.c.b16 %v1746, %v1742
        %v1975 = vpack.c.b16 %v1747, %v1743
        %v1976 = vpack.c.b16 %v1748, %v1744
        %v1977 = vpack.c.b16 %v1753, %v1749
        %v1978 = vpack.c.b16 %v1754, %v1750
        %v1979 = vpack.c.b16 %v1755, %v1751
        %v1980 = vpack.c.b16 %v1756, %v1752
        %v1981 = vpack.c.b16 %v1761, %v1757
        %v1982 = vpack.c.b16 %v1762, %v1758
        %v1983 = vpack.c.b16 %v1763, %v1759
        %v1984 = vpack.c.b16 %v1764, %v1760
        %v1985 = vpack.c.b16 %v1769, %v1765
        %v1986 = vpack.c.b16 %v1770, %v1766
        %v1987 = vpack.c.b16 %v1771, %v1767
        %v1988 = vpack.c.b16 %v1772, %v1768
        %v1989 = vpack.c.b16 %v1777, %v1773
        %v1990 = vpack.c.b16 %v1778, %v1774
        %v1991 = vpack.c.b16 %v1779, %v1775
        %v1992 = vpack.c.b16 %v1780, %v1776
        %v1993 = vpack.c.b16 %v1785, %v1781
        %v1994 = vpack.c.b16 %v1786, %v1782
        %v1995 = vpack.c.b16 %v1787, %v1783
        %v1996 = vpack.c.b16 %v1788, %v1784
        %v1997 = vpack.c.b16 %v1793, %v1789
        %v1998 = vpack.c.b16 %v1794, %v1790
        %v1999 = vpack.c.b16 %v1795, %v1791
        %v2000 = vpack.c.b16 %v1796, %v1792
        %v2001 = vpack.c.b16 %v1801, %v1797
        %v2002 = vpack.c.b16 %v1802, %v1798
        %v2003 = vpack.c.b16 %v1803, %v1799
        %v2004 = vpack.c.b16 %v1804, %v1800
        %v2005 = vpack.c.b16 %v1809, %v1805
        %v2006 = vpack.c.b16 %v1810, %v1806
        %v2007 = vpack.c.b16 %v1811, %v1807
        %v2008 = vpack.c.b16 %v1812, %v1808
        %v2009 = vpack.c.b16 %v1817, %v1813
        %v2010 = vpack.c.b16 %v1818, %v1814
        %v2011 = vpack.c.b16 %v1819, %v1815
        %v2012 = vpack.c.b16 %v1820, %v1816
        %2205 = vmatprep.subr.bf16.mxu0 %v1850
        %2206 = vmatpush1.bf16.msra.mxu0 %v1849
        %2207 = vmatprep.subr.bf16.mxu0 %v1846
        %2208 = vmatpush1.bf16.msra.mxu0 %v1845
        %2209 = vmatprep.subr.bf16.mxu0 %v1842
        %2210 = vmatpush1.bf16.msra.mxu0 %v1841
        %2211 = vmatprep.subr.bf16.mxu0 %v1838
        %2212 = vmatpush1.bf16.msra.mxu0 %v1837
        %2213 = vmatprep.subr.bf16.mxu0 %v1834
        %2214 = vmatpush1.bf16.msra.mxu0 %v1833
        %2215 = vmatprep.subr.bf16.mxu0 %v1830
        %2216 = vmatpush1.bf16.msra.mxu0 %v1829
        %2217 = vmatprep.subr.bf16.mxu0 %v1826
        %2218 = vmatpush1.bf16.msra.mxu0 %v1825
        %2219 = vmatprep.subr.bf16.mxu0 %v1822
        %2220 = vmatpush1.bf16.msra.mxu0 %v1821
        %2221 = vmatprep.subr.bf16.mxu0 %v1882
        %2222 = vmatpush2.bf16.msra.mxu0 %v1881
        %2223 = vmatprep.subr.bf16.mxu0 %v1878
        %2224 = vmatpush2.bf16.msra.mxu0 %v1877
        %2225 = vmatprep.subr.bf16.mxu0 %v1874
        %2226 = vmatpush2.bf16.msra.mxu0 %v1873
        %2227 = vmatprep.subr.bf16.mxu0 %v1870
        %2228 = vmatpush2.bf16.msra.mxu0 %v1869
        %2229 = vmatprep.subr.bf16.mxu0 %v1866
        %2230 = vmatpush2.bf16.msra.mxu0 %v1865
        %2231 = vmatprep.subr.bf16.mxu0 %v1862
        %2232 = vmatpush2.bf16.msra.mxu0 %v1861
        %2233 = vmatprep.subr.bf16.mxu0 %v1858
        %2234 = vmatpush2.bf16.msra.mxu0 %v1857
        %2235 = vmatprep.subr.bf16.mxu0 %v1854
        %2236 = vmatpush2.bf16.msra.mxu0 %v1853
        %2237 = vmatprep.mubr.bf16.mxu0 %v984
        %2238 = vmatmul.mubr.bf16.gmra.mxu0 %v983
        %v2239 = vpop.f32.mrf.mxu0
        %v2240 = vadd.f32 %v1228, %v2239
        %v2241 = vpop.f32.mrf.mxu0
        %v2242 = vadd.f32 %v1232, %v2241
        %v2243 = vpop.f32.mrf.mxu0
        %v2244 = vpop.f32.mrf.mxu0
        %2245 = vdwg.mxu0
        %2246 = vmatprep.subr.bf16.mxu0 %v1914
        %2247 = vmatpush1.bf16.msra.mxu0 %v1913
        %2248 = vmatprep.subr.bf16.mxu0 %v1910
        %2249 = vmatpush1.bf16.msra.mxu0 %v1909
        %2250 = vmatprep.subr.bf16.mxu0 %v1906
        %2251 = vmatpush1.bf16.msra.mxu0 %v1905
        %2252 = vmatprep.subr.bf16.mxu0 %v1902
        %2253 = vmatpush1.bf16.msra.mxu0 %v1901
        %2254 = vmatprep.subr.bf16.mxu0 %v1898
        %2255 = vmatpush1.bf16.msra.mxu0 %v1897
        %2256 = vmatprep.subr.bf16.mxu0 %v1894
        %2257 = vmatpush1.bf16.msra.mxu0 %v1893
        %2258 = vmatprep.subr.bf16.mxu0 %v1890
        %2259 = vmatpush1.bf16.msra.mxu0 %v1889
        %2260 = vmatprep.subr.bf16.mxu0 %v1886
        %2261 = vmatpush1.bf16.msra.mxu0 %v1885
        %2262 = vmatprep.subr.bf16.mxu0 %v1946
        %2263 = vmatpush2.bf16.msra.mxu0 %v1945
        %2264 = vmatprep.subr.bf16.mxu0 %v1942
        %2265 = vmatpush2.bf16.msra.mxu0 %v1941
        %2266 = vmatprep.subr.bf16.mxu0 %v1938
        %2267 = vmatpush2.bf16.msra.mxu0 %v1937
        %2268 = vmatprep.subr.bf16.mxu0 %v1934
        %2269 = vmatpush2.bf16.msra.mxu0 %v1933
        %2270 = vmatprep.subr.bf16.mxu0 %v1930
        %2271 = vmatpush2.bf16.msra.mxu0 %v1929
        %2272 = vmatprep.subr.bf16.mxu0 %v1926
        %2273 = vmatpush2.bf16.msra.mxu0 %v1925
        %2274 = vmatprep.subr.bf16.mxu0 %v1922
        %2275 = vmatpush2.bf16.msra.mxu0 %v1921
        %2276 = vmatprep.subr.bf16.mxu0 %v1918
        %2277 = vmatpush2.bf16.msra.mxu0 %v1917
        %2278 = vmatprep.mubr.bf16.mxu0 %v1006
        %2279 = vmatmul.mubr.bf16.gmra.mxu0 %v1005
        %v2280 = vpop.f32.mrf.mxu0
        %v2281 = vadd.f32 %v2240, %v2280
        %v2282 = vpop.f32.mrf.mxu0
        %v2283 = vadd.f32 %v2242, %v2282
        %v2284 = vpop.f32.mrf.mxu0
        %v2285 = vpop.f32.mrf.mxu0
        %2286 = vdwg.mxu0
        %2287 = vmatprep.subr.bf16.mxu0 %v1978
        %2288 = vmatpush1.bf16.msra.mxu0 %v1977
        %2289 = vmatprep.subr.bf16.mxu0 %v1974
        %2290 = vmatpush1.bf16.msra.mxu0 %v1973
        %2291 = vmatprep.subr.bf16.mxu0 %v1970
        %2292 = vmatpush1.bf16.msra.mxu0 %v1969
        %2293 = vmatprep.subr.bf16.mxu0 %v1966
        %2294 = vmatpush1.bf16.msra.mxu0 %v1965
        %2295 = vmatprep.subr.bf16.mxu0 %v1962
        %2296 = vmatpush1.bf16.msra.mxu0 %v1961
        %2297 = vmatprep.subr.bf16.mxu0 %v1958
        %2298 = vmatpush1.bf16.msra.mxu0 %v1957
        %2299 = vmatprep.subr.bf16.mxu0 %v1954
        %2300 = vmatpush1.bf16.msra.mxu0 %v1953
        %2301 = vmatprep.subr.bf16.mxu0 %v1950
        %2302 = vmatpush1.bf16.msra.mxu0 %v1949
        %2303 = vmatprep.subr.bf16.mxu0 %v2010
        %2304 = vmatpush2.bf16.msra.mxu0 %v2009
        %2305 = vmatprep.subr.bf16.mxu0 %v2006
        %2306 = vmatpush2.bf16.msra.mxu0 %v2005
        %2307 = vmatprep.subr.bf16.mxu0 %v2002
        %2308 = vmatpush2.bf16.msra.mxu0 %v2001
        %2309 = vmatprep.subr.bf16.mxu0 %v1998
        %2310 = vmatpush2.bf16.msra.mxu0 %v1997
        %2311 = vmatprep.subr.bf16.mxu0 %v1994
        %2312 = vmatpush2.bf16.msra.mxu0 %v1993
        %2313 = vmatprep.subr.bf16.mxu0 %v1990
        %2314 = vmatpush2.bf16.msra.mxu0 %v1989
        %2315 = vmatprep.subr.bf16.mxu0 %v1986
        %2316 = vmatpush2.bf16.msra.mxu0 %v1985
        %2317 = vmatprep.subr.bf16.mxu0 %v1982
        %2318 = vmatpush2.bf16.msra.mxu0 %v1981
        %2319 = vmatprep.mubr.bf16.mxu0 %v1028
        %2320 = vmatmul.mubr.bf16.gmra.mxu0 %v1027
        %v2321 = vpop.f32.mrf.mxu0
        %v2322 = vadd.f32 %v2281, %v2321
        %v2323 = vpop.f32.mrf.mxu0
        %v2324 = vadd.f32 %v2283, %v2323
        %v2325 = vpop.f32.mrf.mxu0
        %v2326 = vpop.f32.mrf.mxu0
        %2327 = vdwg.mxu0
        %2328 = vmatprep.subr.bf16.mxu0 %v1852
        %2329 = vmatpush1.bf16.msra.mxu0 %v1851
        %2330 = vmatprep.subr.bf16.mxu0 %v1848
        %2331 = vmatpush1.bf16.msra.mxu0 %v1847
        %2332 = vmatprep.subr.bf16.mxu0 %v1844
        %2333 = vmatpush1.bf16.msra.mxu0 %v1843
        %2334 = vmatprep.subr.bf16.mxu0 %v1840
        %2335 = vmatpush1.bf16.msra.mxu0 %v1839
        %2336 = vmatprep.subr.bf16.mxu0 %v1836
        %2337 = vmatpush1.bf16.msra.mxu0 %v1835
        %2338 = vmatprep.subr.bf16.mxu0 %v1832
        %2339 = vmatpush1.bf16.msra.mxu0 %v1831
        %2340 = vmatprep.subr.bf16.mxu0 %v1828
        %2341 = vmatpush1.bf16.msra.mxu0 %v1827
        %2342 = vmatprep.subr.bf16.mxu0 %v1824
        %2343 = vmatpush1.bf16.msra.mxu0 %v1823
        %2344 = vmatprep.subr.bf16.mxu0 %v1884
        %2345 = vmatpush2.bf16.msra.mxu0 %v1883
        %2346 = vmatprep.subr.bf16.mxu0 %v1880
        %2347 = vmatpush2.bf16.msra.mxu0 %v1879
        %2348 = vmatprep.subr.bf16.mxu0 %v1876
        %2349 = vmatpush2.bf16.msra.mxu0 %v1875
        %2350 = vmatprep.subr.bf16.mxu0 %v1872
        %2351 = vmatpush2.bf16.msra.mxu0 %v1871
        %2352 = vmatprep.subr.bf16.mxu0 %v1868
        %2353 = vmatpush2.bf16.msra.mxu0 %v1867
        %2354 = vmatprep.subr.bf16.mxu0 %v1864
        %2355 = vmatpush2.bf16.msra.mxu0 %v1863
        %2356 = vmatprep.subr.bf16.mxu0 %v1860
        %2357 = vmatpush2.bf16.msra.mxu0 %v1859
        %2358 = vmatprep.subr.bf16.mxu0 %v1856
        %2359 = vmatpush2.bf16.msra.mxu0 %v1855
        %2360 = vmatprep.mubr.bf16.mxu0 %v984
        %2361 = vmatmul.mubr.bf16.gmra.mxu0 %v983
        %v2362 = vpop.f32.mrf.mxu0
        %v2363 = vadd.f32 %v1236, %v2362
        %v2364 = vpop.f32.mrf.mxu0
        %v2365 = vadd.f32 %v1240, %v2364
        %v2366 = vpop.f32.mrf.mxu0
        %v2367 = vpop.f32.mrf.mxu0
        %2368 = vdwg.mxu0
        %2369 = vmatprep.subr.bf16.mxu0 %v1916
        %2370 = vmatpush1.bf16.msra.mxu0 %v1915
        %2371 = vmatprep.subr.bf16.mxu0 %v1912
        %2372 = vmatpush1.bf16.msra.mxu0 %v1911
        %2373 = vmatprep.subr.bf16.mxu0 %v1908
        %2374 = vmatpush1.bf16.msra.mxu0 %v1907
        %2375 = vmatprep.subr.bf16.mxu0 %v1904
        %2376 = vmatpush1.bf16.msra.mxu0 %v1903
        %2377 = vmatprep.subr.bf16.mxu0 %v1900
        %2378 = vmatpush1.bf16.msra.mxu0 %v1899
        %2379 = vmatprep.subr.bf16.mxu0 %v1896
        %2380 = vmatpush1.bf16.msra.mxu0 %v1895
        %2381 = vmatprep.subr.bf16.mxu0 %v1892
        %2382 = vmatpush1.bf16.msra.mxu0 %v1891
        %2383 = vmatprep.subr.bf16.mxu0 %v1888
        %2384 = vmatpush1.bf16.msra.mxu0 %v1887
        %2385 = vmatprep.subr.bf16.mxu0 %v1948
        %2386 = vmatpush2.bf16.msra.mxu0 %v1947
        %2387 = vmatprep.subr.bf16.mxu0 %v1944
        %2388 = vmatpush2.bf16.msra.mxu0 %v1943
        %2389 = vmatprep.subr.bf16.mxu0 %v1940
        %2390 = vmatpush2.bf16.msra.mxu0 %v1939
        %2391 = vmatprep.subr.bf16.mxu0 %v1936
        %2392 = vmatpush2.bf16.msra.mxu0 %v1935
        %2393 = vmatprep.subr.bf16.mxu0 %v1932
        %2394 = vmatpush2.bf16.msra.mxu0 %v1931
        %2395 = vmatprep.subr.bf16.mxu0 %v1928
        %2396 = vmatpush2.bf16.msra.mxu0 %v1927
        %2397 = vmatprep.subr.bf16.mxu0 %v1924
        %2398 = vmatpush2.bf16.msra.mxu0 %v1923
        %2399 = vmatprep.subr.bf16.mxu0 %v1920
        %2400 = vmatpush2.bf16.msra.mxu0 %v1919
        %2401 = vmatprep.mubr.bf16.mxu0 %v1006
        %2402 = vmatmul.mubr.bf16.gmra.mxu0 %v1005
        %v2403 = vpop.f32.mrf.mxu0
        %v2404 = vadd.f32 %v2363, %v2403
        %v2405 = vpop.f32.mrf.mxu0
        %v2406 = vadd.f32 %v2365, %v2405
        %v2407 = vpop.f32.mrf.mxu0
        %v2408 = vpop.f32.mrf.mxu0
        %2409 = vdwg.mxu0
        %2410 = vmatprep.subr.bf16.mxu0 %v1980
        %2411 = vmatpush1.bf16.msra.mxu0 %v1979
        %2412 = vmatprep.subr.bf16.mxu0 %v1976
        %2413 = vmatpush1.bf16.msra.mxu0 %v1975
        %2414 = vmatprep.subr.bf16.mxu0 %v1972
        %2415 = vmatpush1.bf16.msra.mxu0 %v1971
        %2416 = vmatprep.subr.bf16.mxu0 %v1968
        %2417 = vmatpush1.bf16.msra.mxu0 %v1967
        %2418 = vmatprep.subr.bf16.mxu0 %v1964
        %2419 = vmatpush1.bf16.msra.mxu0 %v1963
        %2420 = vmatprep.subr.bf16.mxu0 %v1960
        %2421 = vmatpush1.bf16.msra.mxu0 %v1959
        %2422 = vmatprep.subr.bf16.mxu0 %v1956
        %2423 = vmatpush1.bf16.msra.mxu0 %v1955
        %2424 = vmatprep.subr.bf16.mxu0 %v1952
        %2425 = vmatpush1.bf16.msra.mxu0 %v1951
        %2426 = vmatprep.subr.bf16.mxu0 %v2012
        %2427 = vmatpush2.bf16.msra.mxu0 %v2011
        %2428 = vmatprep.subr.bf16.mxu0 %v2008
        %2429 = vmatpush2.bf16.msra.mxu0 %v2007
        %2430 = vmatprep.subr.bf16.mxu0 %v2004
        %2431 = vmatpush2.bf16.msra.mxu0 %v2003
        %2432 = vmatprep.subr.bf16.mxu0 %v2000
        %2433 = vmatpush2.bf16.msra.mxu0 %v1999
        %2434 = vmatprep.subr.bf16.mxu0 %v1996
        %2435 = vmatpush2.bf16.msra.mxu0 %v1995
        %2436 = vmatprep.subr.bf16.mxu0 %v1992
        %2437 = vmatpush2.bf16.msra.mxu0 %v1991
        %2438 = vmatprep.subr.bf16.mxu0 %v1988
        %2439 = vmatpush2.bf16.msra.mxu0 %v1987
        %2440 = vmatprep.subr.bf16.mxu0 %v1984
        %2441 = vmatpush2.bf16.msra.mxu0 %v1983
        %2442 = vmatprep.mubr.bf16.mxu0 %v1028
        %2443 = vmatmul.mubr.bf16.gmra.mxu0 %v1027
        %v2444 = vpop.f32.mrf.mxu0
        %v2445 = vadd.f32 %v2404, %v2444
        %v2446 = vpop.f32.mrf.mxu0
        %v2447 = vadd.f32 %v2406, %v2446
        %v2448 = vpop.f32.mrf.mxu0
        %v2449 = vpop.f32.mrf.mxu0
        %2450 = vdwg.mxu0
        %v2451 = vmax.f32 %v2322, 0.0
        %v2452 = vmax.f32 %v2324, 0.0
        %v2453 = vmax.f32 %v2445, 0.0
        %v2454 = vmax.f32 %v2447, 0.0
        %v2459 = vcombine.low %v2451, %v2452
        %v2460 = vcombine.high %v2451, %v2452
        %v2461 = vcombine.low %v2453, %v2454
        %v2462 = vcombine.high %v2453, %v2454
        %v2464 = vunpack.c.l.s4 1983009808
        %v2465 = vunpack.c.0.s8 %v2464
        %v2466 = vlaneseq
        %v2467 = vshrl.u32 %v2466, 7
        %v2468 = vsub.s32 %v2465, %v2467
        %v2469 = vrot.slane %v2459, %v2468
        %v2471 = vunpack.c.l.s4 1983009808
        %v2472 = vunpack.c.0.s8 %v2471
        %v2473 = vlaneseq
        %v2474 = vshrl.u32 %v2473, 7
        %v2475 = vsub.s32 %v2472, %v2474
        %v2476 = vrot.slane %v2460, %v2475
        %v2478 = vunpack.c.l.s4 1983009808
        %v2479 = vunpack.c.0.s8 %v2478
        %v2480 = vlaneseq
        %v2481 = vshrl.u32 %v2480, 7
        %v2482 = vsub.s32 %v2479, %v2481
        %v2483 = vrot.slane %v2461, %v2482
        %v2485 = vunpack.c.l.s4 1983009808
        %v2486 = vunpack.c.0.s8 %v2485
        %v2487 = vlaneseq
        %v2488 = vshrl.u32 %v2487, 7
        %v2489 = vsub.s32 %v2486, %v2488
        %v2490 = vrot.slane %v2462, %v2489
        %v2491 = vcombine.low %v2469, %v2483
        %v2492 = vcombine.high %v2469, %v2483
        %v2493 = vcombine.low %v2476, %v2490
        %v2494 = vcombine.high %v2476, %v2490
        %v2495 = vcombine.high %v2491, %v2491
        %v2497 = vunpack.c.l.s4 1983009808
        %v2498 = vunpack.c.0.s8 %v2497
        %v2499 = vlaneseq
        %v2500 = vshrl.u32 %v2499, 7
        %v2501 = vsub.s32 %v2498, %v2500
        %v2502 = vrot.slane %v2491, %v2501
        %v2504 = vunpack.c.l.s4 1983009808
        %v2505 = vunpack.c.0.s8 %v2504
        %v2506 = vlaneseq
        %v2507 = vshrl.u32 %v2506, 7
        %v2508 = vsub.s32 %v2505, %v2507
        %v2509 = vrot.slane %v2495, %v2508
        %v2510 = vcombine.high %v2502, %v2502
        %v2511 = vcombine.high %v2509, %v2509
        %v2512 = vcombine.high %v2492, %v2492
        %v2514 = vunpack.c.l.s4 1983009808
        %v2515 = vunpack.c.0.s8 %v2514
        %v2516 = vlaneseq
        %v2517 = vshrl.u32 %v2516, 7
        %v2518 = vsub.s32 %v2515, %v2517
        %v2519 = vrot.slane %v2492, %v2518
        %v2521 = vunpack.c.l.s4 1983009808
        %v2522 = vunpack.c.0.s8 %v2521
        %v2523 = vlaneseq
        %v2524 = vshrl.u32 %v2523, 7
        %v2525 = vsub.s32 %v2522, %v2524
        %v2526 = vrot.slane %v2512, %v2525
        %v2527 = vcombine.high %v2519, %v2519
        %v2528 = vcombine.high %v2526, %v2526
        %v2529 = vcombine.high %v2493, %v2493
        %v2531 = vunpack.c.l.s4 1983009808
        %v2532 = vunpack.c.0.s8 %v2531
        %v2533 = vlaneseq
        %v2534 = vshrl.u32 %v2533, 7
        %v2535 = vsub.s32 %v2532, %v2534
        %v2536 = vrot.slane %v2493, %v2535
        %v2538 = vunpack.c.l.s4 1983009808
        %v2539 = vunpack.c.0.s8 %v2538
        %v2540 = vlaneseq
        %v2541 = vshrl.u32 %v2540, 7
        %v2542 = vsub.s32 %v2539, %v2541
        %v2543 = vrot.slane %v2529, %v2542
        %v2544 = vcombine.high %v2536, %v2536
        %v2545 = vcombine.high %v2543, %v2543
        %v2546 = vcombine.high %v2494, %v2494
        %v2548 = vunpack.c.l.s4 1983009808
        %v2549 = vunpack.c.0.s8 %v2548
        %v2550 = vlaneseq
        %v2551 = vshrl.u32 %v2550, 7
        %v2552 = vsub.s32 %v2549, %v2551
        %v2553 = vrot.slane %v2494, %v2552
        %v2555 = vunpack.c.l.s4 1983009808
        %v2556 = vunpack.c.0.s8 %v2555
        %v2557 = vlaneseq
        %v2558 = vshrl.u32 %v2557, 7
        %v2559 = vsub.s32 %v2556, %v2558
        %v2560 = vrot.slane %v2546, %v2559
        %v2561 = vcombine.high %v2553, %v2553
        %v2562 = vcombine.high %v2560, %v2560
        %vm2579 = vcmask 1041408
        %v2580 = vsel %vm2579, %v2502, -inf
        %v2581 = vrot.slane %v2580, 4
        %v2582 = vmax.f32 %v2580, %v2581
        %v2583 = vrot.slane %v2582, 2
        %v2584 = vmax.f32 %v2582, %v2583
        %v2585 = vrot.slane %v2584, 1
        %v2586 = vmax.f32 %v2584, %v2585
        %v2587 = vsel %vm2579, %v2510, -inf
        %v2588 = vrot.slane %v2587, 4
        %v2589 = vmax.f32 %v2587, %v2588
        %v2590 = vrot.slane %v2589, 2
        %v2591 = vmax.f32 %v2589, %v2590
        %v2592 = vrot.slane %v2591, 1
        %v2593 = vmax.f32 %v2591, %v2592
        %v2594 = vsel %vm2579, %v2509, -inf
        %v2595 = vrot.slane %v2594, 4
        %v2596 = vmax.f32 %v2594, %v2595
        %v2597 = vrot.slane %v2596, 2
        %v2598 = vmax.f32 %v2596, %v2597
        %v2599 = vrot.slane %v2598, 1
        %v2600 = vmax.f32 %v2598, %v2599
        %v2601 = vsel %vm2579, %v2511, -inf
        %v2602 = vrot.slane %v2601, 4
        %v2603 = vmax.f32 %v2601, %v2602
        %v2604 = vrot.slane %v2603, 2
        %v2605 = vmax.f32 %v2603, %v2604
        %v2606 = vrot.slane %v2605, 1
        %v2607 = vmax.f32 %v2605, %v2606
        %v2608 = vsel %vm2579, %v2519, -inf
        %v2609 = vrot.slane %v2608, 4
        %v2610 = vmax.f32 %v2608, %v2609
        %v2611 = vrot.slane %v2610, 2
        %v2612 = vmax.f32 %v2610, %v2611
        %v2613 = vrot.slane %v2612, 1
        %v2614 = vmax.f32 %v2612, %v2613
        %v2615 = vsel %vm2579, %v2527, -inf
        %v2616 = vrot.slane %v2615, 4
        %v2617 = vmax.f32 %v2615, %v2616
        %v2618 = vrot.slane %v2617, 2
        %v2619 = vmax.f32 %v2617, %v2618
        %v2620 = vrot.slane %v2619, 1
        %v2621 = vmax.f32 %v2619, %v2620
        %v2622 = vsel %vm2579, %v2526, -inf
        %v2623 = vrot.slane %v2622, 4
        %v2624 = vmax.f32 %v2622, %v2623
        %v2625 = vrot.slane %v2624, 2
        %v2626 = vmax.f32 %v2624, %v2625
        %v2627 = vrot.slane %v2626, 1
        %v2628 = vmax.f32 %v2626, %v2627
        %v2629 = vsel %vm2579, %v2528, -inf
        %v2630 = vrot.slane %v2629, 4
        %v2631 = vmax.f32 %v2629, %v2630
        %v2632 = vrot.slane %v2631, 2
        %v2633 = vmax.f32 %v2631, %v2632
        %v2634 = vrot.slane %v2633, 1
        %v2635 = vmax.f32 %v2633, %v2634
        %v2636 = vsel %vm2579, %v2536, -inf
        %v2637 = vrot.slane %v2636, 4
        %v2638 = vmax.f32 %v2636, %v2637
        %v2639 = vrot.slane %v2638, 2
        %v2640 = vmax.f32 %v2638, %v2639
        %v2641 = vrot.slane %v2640, 1
        %v2642 = vmax.f32 %v2640, %v2641
        %v2643 = vsel %vm2579, %v2544, -inf
        %v2644 = vrot.slane %v2643, 4
        %v2645 = vmax.f32 %v2643, %v2644
        %v2646 = vrot.slane %v2645, 2
        %v2647 = vmax.f32 %v2645, %v2646
        %v2648 = vrot.slane %v2647, 1
        %v2649 = vmax.f32 %v2647, %v2648
        %v2650 = vsel %vm2579, %v2543, -inf
        %v2651 = vrot.slane %v2650, 4
        %v2652 = vmax.f32 %v2650, %v2651
        %v2653 = vrot.slane %v2652, 2
        %v2654 = vmax.f32 %v2652, %v2653
        %v2655 = vrot.slane %v2654, 1
        %v2656 = vmax.f32 %v2654, %v2655
        %v2657 = vsel %vm2579, %v2545, -inf
        %v2658 = vrot.slane %v2657, 4
        %v2659 = vmax.f32 %v2657, %v2658
        %v2660 = vrot.slane %v2659, 2
        %v2661 = vmax.f32 %v2659, %v2660
        %v2662 = vrot.slane %v2661, 1
        %v2663 = vmax.f32 %v2661, %v2662
        %v2664 = vsel %vm2579, %v2553, -inf
        %v2665 = vrot.slane %v2664, 4
        %v2666 = vmax.f32 %v2664, %v2665
        %v2667 = vrot.slane %v2666, 2
        %v2668 = vmax.f32 %v2666, %v2667
        %v2669 = vrot.slane %v2668, 1
        %v2670 = vmax.f32 %v2668, %v2669
        %v2671 = vsel %vm2579, %v2561, -inf
        %v2672 = vrot.slane %v2671, 4
        %v2673 = vmax.f32 %v2671, %v2672
        %v2674 = vrot.slane %v2673, 2
        %v2675 = vmax.f32 %v2673, %v2674
        %v2676 = vrot.slane %v2675, 1
        %v2677 = vmax.f32 %v2675, %v2676
        %v2678 = vsel %vm2579, %v2560, -inf
        %v2679 = vrot.slane %v2678, 4
        %v2680 = vmax.f32 %v2678, %v2679
        %v2681 = vrot.slane %v2680, 2
        %v2682 = vmax.f32 %v2680, %v2681
        %v2683 = vrot.slane %v2682, 1
        %v2684 = vmax.f32 %v2682, %v2683
        %v2685 = vsel %vm2579, %v2562, -inf
        %v2686 = vrot.slane %v2685, 4
        %v2687 = vmax.f32 %v2685, %v2686
        %v2688 = vrot.slane %v2687, 2
        %v2689 = vmax.f32 %v2687, %v2688
        %v2690 = vrot.slane %v2689, 1
        %v2691 = vmax.f32 %v2689, %v2690
        %v2708 = vcombine.low %v2586, %v2593
        %v2709 = vcombine.low %v2600, %v2607
        %v2710 = vcombine.low %v2614, %v2621
        %v2711 = vcombine.low %v2628, %v2635
        %v2712 = vcombine.low %v2642, %v2649
        %v2713 = vcombine.low %v2656, %v2663
        %v2714 = vcombine.low %v2670, %v2677
        %v2715 = vcombine.low %v2684, %v2691
        %v2716 = vrot.slane %v2710, 7
        %v2717 = vsel %vm962, %v2716, %v2708
        %v2718 = vsel %vm970, %v2716, %v2717
        %v2719 = vrot.slane %v2712, 6
        %v2720 = vsel %vm964, %v2719, %v2718
        %v2721 = vsel %vm972, %v2719, %v2720
        %v2722 = vrot.slane %v2714, 5
        %v2723 = vsel %vm966, %v2722, %v2721
        %v2724 = vsel %vm974, %v2722, %v2723
        %v2725 = vrot.slane %v2711, 7
        %v2726 = vsel %vm962, %v2725, %v2709
        %v2727 = vsel %vm970, %v2725, %v2726
        %v2728 = vrot.slane %v2713, 6
        %v2729 = vsel %vm964, %v2728, %v2727
        %v2730 = vsel %vm972, %v2728, %v2729
        %v2731 = vrot.slane %v2715, 5
        %v2732 = vsel %vm966, %v2731, %v2730
        %v2733 = vsel %vm974, %v2731, %v2732
        %2736 = vst [vmem:[%s262] sm:$0xff] %v2724
        %2737 = vst [vmem:[%s262 + $0x8] sm:$0xff] %v2733
        %s2738 = sand.u32 %s135, 1
        %s2739 = scalar_lea.sflag [#allocation4], %s2738
        %s2740 = sand.u32 %s135, 1
        %s2741 = smul.addr %s2740, 16
        %s2742 = scalar_lea.vmem [#allocation8], %s2741
        // Predicated region
        $region49: #{tpu_custom_call.1} parent=35 // pred_check
          %p2743 = pneg %p145
        $region50: #{tpu_custom_call.1} parent=35 // pred_check_branch
          %2745 = sbr.rel (%p2743) target = $region52
        $region51: #{tpu_custom_call.1} parent=35 // pred_region
          %s2747 = ssub.s32 256, 256
          %2748 = vsyncadd %s2739, %s2747
          %s2749 = smul.addr %s27, 4
          %s2750 = smul.addr %s26, 4
          %s2751 = sadd.s32 %s2749, %s2750
          %s2752 = smul.addr %s2751, 64
          %s2753 = scalar_lea.hbm %s4, %s2752
          %s2755 = sshll.u32 %s2742, 4
          %s2756 = int_to_ptr.vmem [resolvable:$true] %s2755
          %2758 = dma.vmem_to_hbm [thread:$0]  %s2756, 256, %s2753, %s2739
        $region52: #{tpu_custom_call.1} parent=35 // pred_fallthru
          _
      $region36: #{tpu_custom_call.1} parent=5 // pred_fallthru
        _
      %p2759 = scmp.le.s32.totalorder 2, %s17
      // Predicated region
      $region53: #{tpu_custom_call.1} parent=5 // pred_check
        %p2760 = pneg %p2759
      $region54: #{tpu_custom_call.1} parent=5 // pred_check_branch
        %2762 = sbr.rel (%p2760) target = $region56
      $region55: #{tpu_custom_call.1} parent=5 // pred_region
        %s2763 = ssub.s32 %s17, 2
        // Predicated region
        $region57: #{tpu_custom_call.1} parent=55 // pred_check
          %p2764 = pneg %p151
        $region58: #{tpu_custom_call.1} parent=55 // pred_check_branch
          %2766 = sbr.rel (%p2764) target = $region60
        $region59: #{tpu_custom_call.1} parent=55 // pred_region
          %s2767 = sand.u32 %s136, 1
          %s2768 = scalar_lea.sflag [#allocation4], %s2767
          %s2769 = sand.u32 %s136, 1
          %s2770 = smul.addr %s2769, 16
          %s2771 = scalar_lea.vmem [#allocation8], %s2770
          %2772 = dma.done %s2768, 256
        $region60: #{tpu_custom_call.1} parent=55 // pred_fallthru
          _
      $region56: #{tpu_custom_call.1} parent=5 // pred_fallthru
        _
    $region6: #{tpu_custom_call.1} parent=1 // loop_footer
      %s21 = sadd.s32 1, %s17
    $region7: #{tpu_custom_call.1} parent=1 // loop_footer_branch
      %16 = sbr.rel target = $region3
    $region8: #{tpu_custom_call.1} parent=1 // loop_exit
      _
    %2773 = vsyncpa [#allocation3], 1
    %s2774 = scalar_lea.sflag [#allocation3], 1
    %2775 = vsyncpa %s2774, 1
    %2776 = vsyncpa [#allocation6], 1
    %2777 = vsyncpa [#allocation4], 1
    %s2778 = scalar_lea.sflag [#allocation4], 1
    %2779 = vsyncpa %s2778, 1

</llo_original>
